<compile_context>
chip_gen: v7x
topology: tpu7x:2x2x1
jax: 0.10.0
libtpu: 0.0.40
codegen_flags: <defaults>
</compile_context>

<pallas_src>
import jax
import jax.numpy as jnp
from jax.experimental import pallas as pl
from jax.experimental.pallas import tpu as pltpu

LAYER_DIMS = [28 * 28, 128, 64, 12, 3, 12, 64, 128, 28 * 28]
N_LAYERS = len(LAYER_DIMS) - 1                 # 8 linear layers
ACTS = ("relu", "relu", "relu", "none", "relu", "relu", "relu", "sigmoid")
MAX_OUT = max(LAYER_DIMS[1:])                  # 784: lane width of packed bias buffer


def _round_up(x, m):
    return ((x + m - 1) // m) * m


def autoencoder_kernel(x_ref, *refs):
    """refs = (w1..w8 [bf16, (in,out)], bias_pack [f32, (8, MAX_OUT)], out_ref)."""
    out_ref = refs[-1]
    bias_ref = refs[-2]
    w_refs = refs[:-2]

    h = x_ref[...]                              # (TB, 784), input dtype
    for i in range(N_LAYERS):
        w = w_refs[i][...]                      # bf16 (in_i, out_i), VMEM-resident
        out_dim = LAYER_DIMS[i + 1]
        b = bias_ref[i:i + 1, :out_dim]         # (1, out_i) f32, cheap per-layer vld
        # bf16 x bf16 on the MXU, f32 accumulation; single cast of the activations.
        h = jnp.dot(h.astype(w.dtype), w, preferred_element_type=jnp.float32) + b
        act = ACTS[i]
        if act == "relu":
            h = jnp.maximum(h, 0.0)
        elif act == "sigmoid":
            # sigmoid(x) == 0.5*tanh(0.5*x) + 0.5 : one EUP push per vreg.
            h = 0.5 * jnp.tanh(0.5 * h) + 0.5
    out_ref[...] = h.astype(out_ref.dtype)


def init_params(key):
    """Deterministic PyTorch-style init: U(-1/sqrt(fan_in), 1/sqrt(fan_in)).

    Weights stored pre-transposed as (in, out) so the kernel computes y = x @ W + b.
    """
    params = []
    for i in range(N_LAYERS):
        fan_in, fan_out = LAYER_DIMS[i], LAYER_DIMS[i + 1]
        key, kw, kb = jax.random.split(key, 3)
        bound = 1.0 / jnp.sqrt(fan_in)
        w = jax.random.uniform(kw, (fan_in, fan_out), jnp.float32, -bound, bound)
        b = jax.random.uniform(kb, (1, fan_out), jnp.float32, -bound, bound)
        params.append((w, b))
    return params


def prepare_params(params):
    """Cast weights to bf16 and pack the 8 biases into one (8, MAX_OUT) f32 buffer."""
    weights_bf16 = tuple(w.astype(jnp.bfloat16) for (w, _) in params)
    bias_pack = jnp.zeros((N_LAYERS, MAX_OUT), jnp.float32)
    for i, (_, b) in enumerate(params):
        bias_pack = bias_pack.at[i, : b.shape[1]].set(b[0])
    return weights_bf16, bias_pack


def _choose_tile(B, block_b):
    """Pick (tile_rows, n_blocks) : tile is a multiple of 8 rows, padding < 8 rows
    per block, and >= 2 blocks whenever there is enough work to feed both v7x TCs."""
    n_blocks = max(1, pl.cdiv(B, block_b))
    if B > 256:                       # enough rows to make a 2-way TC split worthwhile
        n_blocks = max(n_blocks, 2)
    tb = _round_up(pl.cdiv(B, n_blocks), 8)
    n_blocks = pl.cdiv(B, tb)
    return tb, n_blocks


def autoencoder_forward(x, weights_bf16, bias_pack, *, block_b=1024,
                        out_dtype=jnp.bfloat16):
    B, D = x.shape
    assert D == LAYER_DIMS[0]

    tb, n_blocks = _choose_tile(B, block_b)
    Bp = n_blocks * tb
    # Only hit when B % 8 != 0; pads at most 7*n_blocks rows (no pathological copy).
    xp = x if Bp == B else jnp.pad(x, ((0, Bp - B), (0, 0)))

    in_specs = [pl.BlockSpec((tb, LAYER_DIMS[0]), lambda i: (i, 0))]   # streamed x
    for w in weights_bf16:                                             # resident weights
        in_specs.append(pl.BlockSpec(tuple(w.shape), lambda i: (0, 0)))
    in_specs.append(pl.BlockSpec(tuple(bias_pack.shape), lambda i: (0, 0)))

    out = pl.pallas_call(
        autoencoder_kernel,
        out_shape=jax.ShapeDtypeStruct((Bp, LAYER_DIMS[-1]), out_dtype),
        grid=(n_blocks,),
        in_specs=in_specs,
        out_specs=pl.BlockSpec((tb, LAYER_DIMS[-1]), lambda i: (i, 0)),
        compiler_params=pltpu.CompilerParams(
            dimension_semantics=("parallel",),      # shard batch tiles across TCs (v7x)
            vmem_limit_bytes=48 * 1024 * 1024,      # headroom under v7x's 64 MiB
        ),
    )(xp, *weights_bf16, bias_pack)

    return out[:B] if Bp != B else out


def reference_forward(x, params):
    """Pure-JAX f32 reference matching the PyTorch module exactly."""
    h = x
    for i, (w, b) in enumerate(params):
        h = h @ w + b
        if ACTS[i] == "relu":
            h = jnp.maximum(h, 0.0)
        elif ACTS[i] == "sigmoid":
            h = jax.nn.sigmoid(h)
    return h


if __name__ == "__main__":
    key = jax.random.PRNGKey(0)
    key, kx = jax.random.split(key)

    B = 8
    x = jax.random.uniform(kx, (B, 28 * 28), jnp.float32)  # MNIST-flattened style input
    params = init_params(key)
    weights_bf16, bias_pack = prepare_params(params)

    out = autoencoder_forward(x, weights_bf16, bias_pack)
    out = jax.block_until_ready(out)

    ref = reference_forward(x, params)
    assert out.shape == (B, 28 * 28)
    # bf16 matmul operands + bf16 output vs f32 reference -> relaxed tolerance
    # (output is post-sigmoid, values in [0, 1]).
    max_err = float(jnp.max(jnp.abs(out.astype(jnp.float32) - ref)))
    assert max_err < 2e-2, f"mismatch vs pure-JAX reference: max abs err {max_err}"

    print("KERNEL_OK")
</pallas_src>

<mosaic_0001>
module attributes {stable_mosaic.version = 11 : i64} {
  func.func @autoencoder_kernel(%arg0: i32, %arg1: memref<8x784xf32, #tpu.memory_space<vmem>>, %arg2: memref<784x128xbf16, #tpu.memory_space<vmem>>, %arg3: memref<128x64xbf16, #tpu.memory_space<vmem>>, %arg4: memref<64x12xbf16, #tpu.memory_space<vmem>>, %arg5: memref<12x3xbf16, #tpu.memory_space<vmem>>, %arg6: memref<3x12xbf16, #tpu.memory_space<vmem>>, %arg7: memref<12x64xbf16, #tpu.memory_space<vmem>>, %arg8: memref<64x128xbf16, #tpu.memory_space<vmem>>, %arg9: memref<128x784xbf16, #tpu.memory_space<vmem>>, %arg10: memref<8x784xf32, #tpu.memory_space<vmem>>, %arg11: memref<8x784xbf16, #tpu.memory_space<vmem>>) attributes {dimension_semantics = [#tpu.dimension_semantics<parallel>], iteration_bounds = array<i64: 1>, scalar_prefetch = 0 : i64, scratch_operands = 0 : i64, tpu.core_type = #tpu.core_type<tc>, window_params = [{transform_indices = @transform_0, window_bounds = array<i64: 8, 784>}, {pipeline_mode = #tpu.pipeline_mode<synchronous>, transform_indices = @transform_1, window_bounds = array<i64: 784, 128>}, {pipeline_mode = #tpu.pipeline_mode<synchronous>, transform_indices = @transform_2, window_bounds = array<i64: 128, 64>}, {pipeline_mode = #tpu.pipeline_mode<synchronous>, transform_indices = @transform_3, window_bounds = array<i64: 64, 12>}, {pipeline_mode = #tpu.pipeline_mode<synchronous>, transform_indices = @transform_4, window_bounds = array<i64: 12, 3>}, {pipeline_mode = #tpu.pipeline_mode<synchronous>, transform_indices = @transform_5, window_bounds = array<i64: 3, 12>}, {pipeline_mode = #tpu.pipeline_mode<synchronous>, transform_indices = @transform_6, window_bounds = array<i64: 12, 64>}, {pipeline_mode = #tpu.pipeline_mode<synchronous>, transform_indices = @transform_7, window_bounds = array<i64: 64, 128>}, {pipeline_mode = #tpu.pipeline_mode<synchronous>, transform_indices = @transform_8, window_bounds = array<i64: 128, 784>}, {pipeline_mode = #tpu.pipeline_mode<synchronous>, transform_indices = @transform_9, window_bounds = array<i64: 8, 784>}, {transform_indices = @transform_10, window_bounds = array<i64: 8, 784>}]} {
    %c0 = arith.constant 0 : index
    %c0_0 = arith.constant 0 : index
    %0 = vector.load %arg1[%c0, %c0_0] : memref<8x784xf32, #tpu.memory_space<vmem>>, vector<8x784xf32>
    %c0_1 = arith.constant 0 : index
    %c0_2 = arith.constant 0 : index
    %1 = vector.load %arg2[%c0_1, %c0_2] : memref<784x128xbf16, #tpu.memory_space<vmem>>, vector<784x128xbf16>
    %c0_3 = arith.constant 0 : index
    %c0_4 = arith.constant 0 : index
    %2 = vector.load %arg10[%c0_3, %c0_4] : memref<8x784xf32, #tpu.memory_space<vmem>>, vector<1x128xf32>
    %3 = arith.truncf %0 : vector<8x784xf32> to vector<8x784xbf16>
    %cst = arith.constant dense<0.000000e+00> : vector<8x128xf32>
    %4 = tpu.matmul %3, %1, %cst {dimension_numbers = #tpu.dot_dimension_numbers<[1], [0], [0], [1], [0, 0, 1, 1], [], []>} : vector<8x784xbf16>, vector<784x128xbf16>, vector<8x128xf32> -> vector<8x128xf32>
    %5 = vector.broadcast %2 : vector<1x128xf32> to vector<8x128xf32>
    %6 = arith.addf %4, %5 : vector<8x128xf32>
    %cst_5 = arith.constant 0.000000e+00 : f32
    %7 = vector.broadcast %cst_5 : f32 to vector<8x128xf32>
    %8 = arith.maximumf %6, %7 : vector<8x128xf32>
    %c0_6 = arith.constant 0 : index
    %c0_7 = arith.constant 0 : index
    %9 = vector.load %arg3[%c0_6, %c0_7] : memref<128x64xbf16, #tpu.memory_space<vmem>>, vector<128x64xbf16>
    %c1 = arith.constant 1 : index
    %c0_8 = arith.constant 0 : index
    %10 = vector.load %arg10[%c1, %c0_8] : memref<8x784xf32, #tpu.memory_space<vmem>>, vector<1x64xf32>
    %11 = arith.truncf %8 : vector<8x128xf32> to vector<8x128xbf16>
    %cst_9 = arith.constant dense<0.000000e+00> : vector<8x64xf32>
    %12 = tpu.matmul %11, %9, %cst_9 {dimension_numbers = #tpu.dot_dimension_numbers<[1], [0], [0], [1], [0, 0, 1, 1], [], []>} : vector<8x128xbf16>, vector<128x64xbf16>, vector<8x64xf32> -> vector<8x64xf32>
    %13 = vector.broadcast %10 : vector<1x64xf32> to vector<8x64xf32>
    %14 = arith.addf %12, %13 : vector<8x64xf32>
    %cst_10 = arith.constant 0.000000e+00 : f32
    %15 = vector.broadcast %cst_10 : f32 to vector<8x64xf32>
    %16 = arith.maximumf %14, %15 : vector<8x64xf32>
    %c0_11 = arith.constant 0 : index
    %c0_12 = arith.constant 0 : index
    %17 = vector.load %arg4[%c0_11, %c0_12] : memref<64x12xbf16, #tpu.memory_space<vmem>>, vector<64x12xbf16>
    %c2 = arith.constant 2 : index
    %c0_13 = arith.constant 0 : index
    %18 = vector.load %arg10[%c2, %c0_13] : memref<8x784xf32, #tpu.memory_space<vmem>>, vector<1x12xf32>
    %19 = arith.truncf %16 : vector<8x64xf32> to vector<8x64xbf16>
    %cst_14 = arith.constant dense<0.000000e+00> : vector<8x12xf32>
    %20 = tpu.matmul %19, %17, %cst_14 {dimension_numbers = #tpu.dot_dimension_numbers<[1], [0], [0], [1], [0, 0, 1, 1], [], []>} : vector<8x64xbf16>, vector<64x12xbf16>, vector<8x12xf32> -> vector<8x12xf32>
    %21 = vector.broadcast %18 : vector<1x12xf32> to vector<8x12xf32>
    %22 = arith.addf %20, %21 : vector<8x12xf32>
    %cst_15 = arith.constant 0.000000e+00 : f32
    %23 = vector.broadcast %cst_15 : f32 to vector<8x12xf32>
    %24 = arith.maximumf %22, %23 : vector<8x12xf32>
    %c0_16 = arith.constant 0 : index
    %c0_17 = arith.constant 0 : index
    %25 = vector.load %arg5[%c0_16, %c0_17] : memref<12x3xbf16, #tpu.memory_space<vmem>>, vector<12x3xbf16>
    %c3 = arith.constant 3 : index
    %c0_18 = arith.constant 0 : index
    %26 = vector.load %arg10[%c3, %c0_18] : memref<8x784xf32, #tpu.memory_space<vmem>>, vector<1x3xf32>
    %27 = arith.truncf %24 : vector<8x12xf32> to vector<8x12xbf16>
    %cst_19 = arith.constant dense<0.000000e+00> : vector<8x3xf32>
    %28 = tpu.matmul %27, %25, %cst_19 {dimension_numbers = #tpu.dot_dimension_numbers<[1], [0], [0], [1], [0, 0, 1, 1], [], []>} : vector<8x12xbf16>, vector<12x3xbf16>, vector<8x3xf32> -> vector<8x3xf32>
    %29 = vector.broadcast %26 : vector<1x3xf32> to vector<8x3xf32>
    %30 = arith.addf %28, %29 : vector<8x3xf32>
    %c0_20 = arith.constant 0 : index
    %c0_21 = arith.constant 0 : index
    %31 = vector.load %arg6[%c0_20, %c0_21] : memref<3x12xbf16, #tpu.memory_space<vmem>>, vector<3x12xbf16>
    %c4 = arith.constant 4 : index
    %c0_22 = arith.constant 0 : index
    %32 = vector.load %arg10[%c4, %c0_22] : memref<8x784xf32, #tpu.memory_space<vmem>>, vector<1x12xf32>
    %33 = arith.truncf %30 : vector<8x3xf32> to vector<8x3xbf16>
    %cst_23 = arith.constant dense<0.000000e+00> : vector<8x12xf32>
    %34 = tpu.matmul %33, %31, %cst_23 {dimension_numbers = #tpu.dot_dimension_numbers<[1], [0], [0], [1], [0, 0, 1, 1], [], []>} : vector<8x3xbf16>, vector<3x12xbf16>, vector<8x12xf32> -> vector<8x12xf32>
    %35 = vector.broadcast %32 : vector<1x12xf32> to vector<8x12xf32>
    %36 = arith.addf %34, %35 : vector<8x12xf32>
    %cst_24 = arith.constant 0.000000e+00 : f32
    %37 = vector.broadcast %cst_24 : f32 to vector<8x12xf32>
    %38 = arith.maximumf %36, %37 : vector<8x12xf32>
    %c0_25 = arith.constant 0 : index
    %c0_26 = arith.constant 0 : index
    %39 = vector.load %arg7[%c0_25, %c0_26] : memref<12x64xbf16, #tpu.memory_space<vmem>>, vector<12x64xbf16>
    %c5 = arith.constant 5 : index
    %c0_27 = arith.constant 0 : index
    %40 = vector.load %arg10[%c5, %c0_27] : memref<8x784xf32, #tpu.memory_space<vmem>>, vector<1x64xf32>
    %41 = arith.truncf %38 : vector<8x12xf32> to vector<8x12xbf16>
    %cst_28 = arith.constant dense<0.000000e+00> : vector<8x64xf32>
    %42 = tpu.matmul %41, %39, %cst_28 {dimension_numbers = #tpu.dot_dimension_numbers<[1], [0], [0], [1], [0, 0, 1, 1], [], []>} : vector<8x12xbf16>, vector<12x64xbf16>, vector<8x64xf32> -> vector<8x64xf32>
    %43 = vector.broadcast %40 : vector<1x64xf32> to vector<8x64xf32>
    %44 = arith.addf %42, %43 : vector<8x64xf32>
    %cst_29 = arith.constant 0.000000e+00 : f32
    %45 = vector.broadcast %cst_29 : f32 to vector<8x64xf32>
    %46 = arith.maximumf %44, %45 : vector<8x64xf32>
    %c0_30 = arith.constant 0 : index
    %c0_31 = arith.constant 0 : index
    %47 = vector.load %arg8[%c0_30, %c0_31] : memref<64x128xbf16, #tpu.memory_space<vmem>>, vector<64x128xbf16>
    %c6 = arith.constant 6 : index
    %c0_32 = arith.constant 0 : index
    %48 = vector.load %arg10[%c6, %c0_32] : memref<8x784xf32, #tpu.memory_space<vmem>>, vector<1x128xf32>
    %49 = arith.truncf %46 : vector<8x64xf32> to vector<8x64xbf16>
    %cst_33 = arith.constant dense<0.000000e+00> : vector<8x128xf32>
    %50 = tpu.matmul %49, %47, %cst_33 {dimension_numbers = #tpu.dot_dimension_numbers<[1], [0], [0], [1], [0, 0, 1, 1], [], []>} : vector<8x64xbf16>, vector<64x128xbf16>, vector<8x128xf32> -> vector<8x128xf32>
    %51 = vector.broadcast %48 : vector<1x128xf32> to vector<8x128xf32>
    %52 = arith.addf %50, %51 : vector<8x128xf32>
    %cst_34 = arith.constant 0.000000e+00 : f32
    %53 = vector.broadcast %cst_34 : f32 to vector<8x128xf32>
    %54 = arith.maximumf %52, %53 : vector<8x128xf32>
    %c0_35 = arith.constant 0 : index
    %c0_36 = arith.constant 0 : index
    %55 = vector.load %arg9[%c0_35, %c0_36] : memref<128x784xbf16, #tpu.memory_space<vmem>>, vector<128x784xbf16>
    %c7 = arith.constant 7 : index
    %c0_37 = arith.constant 0 : index
    %56 = vector.load %arg10[%c7, %c0_37] : memref<8x784xf32, #tpu.memory_space<vmem>>, vector<1x784xf32>
    %57 = arith.truncf %54 : vector<8x128xf32> to vector<8x128xbf16>
    %cst_38 = arith.constant dense<0.000000e+00> : vector<8x784xf32>
    %58 = tpu.matmul %57, %55, %cst_38 {dimension_numbers = #tpu.dot_dimension_numbers<[1], [0], [0], [1], [0, 0, 1, 1], [], []>} : vector<8x128xbf16>, vector<128x784xbf16>, vector<8x784xf32> -> vector<8x784xf32>
    %59 = vector.broadcast %56 : vector<1x784xf32> to vector<8x784xf32>
    %60 = arith.addf %58, %59 : vector<8x784xf32>
    %cst_39 = arith.constant 5.000000e-01 : f32
    %61 = vector.broadcast %cst_39 : f32 to vector<8x784xf32>
    %62 = arith.mulf %61, %60 : vector<8x784xf32>
    %63 = math.tanh %62 : vector<8x784xf32>
    %cst_40 = arith.constant 5.000000e-01 : f32
    %64 = vector.broadcast %cst_40 : f32 to vector<8x784xf32>
    %65 = arith.mulf %64, %63 : vector<8x784xf32>
    %cst_41 = arith.constant 5.000000e-01 : f32
    %66 = vector.broadcast %cst_41 : f32 to vector<8x784xf32>
    %67 = arith.addf %65, %66 : vector<8x784xf32>
    %68 = arith.truncf %67 : vector<8x784xf32> to vector<8x784xbf16>
    %c0_42 = arith.constant 0 : index
    %c0_43 = arith.constant 0 : index
    %69 = vector.load %arg11[%c0_42, %c0_43] : memref<8x784xbf16, #tpu.memory_space<vmem>>, vector<8x784xbf16>
    tpu.vector_store %arg11[%c0_42, %c0_43], %68 {strides = array<i32>} : memref<8x784xbf16, #tpu.memory_space<vmem>>, vector<8x784xbf16>,
    return
  }
  func.func @transform_0(%arg0: i32) -> (i32, i32) {
    %c0_i32 = arith.constant 0 : i32
    %c0_i32_0 = arith.constant 0 : i32
    return %arg0, %c0_i32 : i32, i32
  }
  func.func @transform_1(%arg0: i32) -> (i32, i32) {
    %c0_i32 = arith.constant 0 : i32
    %c0_i32_0 = arith.constant 0 : i32
    %c0_i32_1 = arith.constant 0 : i32
    return %c0_i32, %c0_i32_0 : i32, i32
  }
  func.func @transform_2(%arg0: i32) -> (i32, i32) {
    %c0_i32 = arith.constant 0 : i32
    %c0_i32_0 = arith.constant 0 : i32
    %c0_i32_1 = arith.constant 0 : i32
    return %c0_i32, %c0_i32_0 : i32, i32
  }
  func.func @transform_3(%arg0: i32) -> (i32, i32) {
    %c0_i32 = arith.constant 0 : i32
    %c0_i32_0 = arith.constant 0 : i32
    %c0_i32_1 = arith.constant 0 : i32
    return %c0_i32, %c0_i32_0 : i32, i32
  }
  func.func @transform_4(%arg0: i32) -> (i32, i32) {
    %c0_i32 = arith.constant 0 : i32
    %c0_i32_0 = arith.constant 0 : i32
    %c0_i32_1 = arith.constant 0 : i32
    return %c0_i32, %c0_i32_0 : i32, i32
  }
  func.func @transform_5(%arg0: i32) -> (i32, i32) {
    %c0_i32 = arith.constant 0 : i32
    %c0_i32_0 = arith.constant 0 : i32
    %c0_i32_1 = arith.constant 0 : i32
    return %c0_i32, %c0_i32_0 : i32, i32
  }
  func.func @transform_6(%arg0: i32) -> (i32, i32) {
    %c0_i32 = arith.constant 0 : i32
    %c0_i32_0 = arith.constant 0 : i32
    %c0_i32_1 = arith.constant 0 : i32
    return %c0_i32, %c0_i32_0 : i32, i32
  }
  func.func @transform_7(%arg0: i32) -> (i32, i32) {
    %c0_i32 = arith.constant 0 : i32
    %c0_i32_0 = arith.constant 0 : i32
    %c0_i32_1 = arith.constant 0 : i32
    return %c0_i32, %c0_i32_0 : i32, i32
  }
  func.func @transform_8(%arg0: i32) -> (i32, i32) {
    %c0_i32 = arith.constant 0 : i32
    %c0_i32_0 = arith.constant 0 : i32
    %c0_i32_1 = arith.constant 0 : i32
    return %c0_i32, %c0_i32_0 : i32, i32
  }
  func.func @transform_9(%arg0: i32) -> (i32, i32) {
    %c0_i32 = arith.constant 0 : i32
    %c0_i32_0 = arith.constant 0 : i32
    %c0_i32_1 = arith.constant 0 : i32
    return %c0_i32, %c0_i32_0 : i32, i32
  }
  func.func @transform_10(%arg0: i32) -> (i32, i32) {
    %c0_i32 = arith.constant 0 : i32
    %c0_i32_0 = arith.constant 0 : i32
    return %arg0, %c0_i32 : i32, i32
  }
}

</mosaic_0001>

<llo_original>
// kernel: tpu_custom_call.1
$region0: #{tpu_custom_call.1}
  #allocation0 [shape = 'u32[]', space=smem, size = 0x4, offset = 0x4, fixed_abs, tag = 'smem constant byte address 0x4 - core index']
  #allocation1 [shape = 'u32[144,128]{1,0:T(1,128)}', space=vmem, size = 0x12000, scoped, tag = 'internal scratch']
  %s0 = inlined_call_operand.vmem [shape: f32[8,784], index: 0, kind: input, shape index: {}]
  %s1 = inlined_call_operand.vmem [shape: bf16[784,128], index: 1, kind: input, shape index: {}]
  %s2 = inlined_call_operand.vmem [shape: bf16[128,64], index: 2, kind: input, shape index: {}]
  %s3 = inlined_call_operand.vmem [shape: bf16[64,12], index: 3, kind: input, shape index: {}]
  %s4 = inlined_call_operand.vmem [shape: bf16[12,3], index: 4, kind: input, shape index: {}]
  %s5 = inlined_call_operand.vmem [shape: bf16[3,12], index: 5, kind: input, shape index: {}]
  %s6 = inlined_call_operand.vmem [shape: bf16[12,64], index: 6, kind: input, shape index: {}]
  %s7 = inlined_call_operand.vmem [shape: bf16[64,128], index: 7, kind: input, shape index: {}]
  %s8 = inlined_call_operand.vmem [shape: bf16[128,784], index: 8, kind: input, shape index: {}]
  %s9 = inlined_call_operand.vmem [shape: f32[8,784], index: 9, kind: input, shape index: {}]
  %s10 = inlined_call_operand.hbm [shape: bf16[8,784], index: 10, kind: output, shape index: {}]
  %s11 = sld [smem:[#allocation0]]
  $region50: #{tpu_custom_call.1} parent=0
    _
  %s13 = ssub.s32 1, %s11
  %s14 = scalar_select 0, %s13, %s11
  $region1: #{tpu_custom_call.1} parent=0
    #allocation2 [shape = 'u8[14336]{0}', space=vmem, size = 0x3800, scoped, tag = 'output window, operand 0, single buffered']
    #allocation3 [shape = 's32[1]{0}', space=sflag, size = 0x4, scoped, tag = 'scoped memory for tpu_custom_call.1']
    %15 = vsyncpa [#allocation3], 0
    // Predicated region
    $region2: #{tpu_custom_call.1} parent=1 // pred_check
      _
    $region3: #{tpu_custom_call.1} parent=1 // pred_check_branch
      %17 = sbr.rel (0) target = $region5
    $region4: #{tpu_custom_call.1} parent=1 // pred_region
      _
    $region5: #{tpu_custom_call.1} parent=1 // pred_fallthru
      _
    // Predicated region
    $region6: #{tpu_custom_call.1} parent=1 // pred_check
      _
    $region7: #{tpu_custom_call.1} parent=1 // pred_check_branch
      %19 = sbr.rel (0) target = $region9
    $region8: #{tpu_custom_call.1} parent=1 // pred_region
      _
    $region9: #{tpu_custom_call.1} parent=1 // pred_fallthru
      _
    // Predicated region
    $region10: #{tpu_custom_call.1} parent=1 // pred_check
      _
    $region11: #{tpu_custom_call.1} parent=1 // pred_check_branch
      %21 = sbr.rel (0) target = $region13
    $region12: #{tpu_custom_call.1} parent=1 // pred_region
      _
    $region13: #{tpu_custom_call.1} parent=1 // pred_fallthru
      _
    // Predicated region
    $region14: #{tpu_custom_call.1} parent=1 // pred_check
      _
    $region15: #{tpu_custom_call.1} parent=1 // pred_check_branch
      %23 = sbr.rel (0) target = $region17
    $region16: #{tpu_custom_call.1} parent=1 // pred_region
      _
    $region17: #{tpu_custom_call.1} parent=1 // pred_fallthru
      _
    // Predicated region
    $region18: #{tpu_custom_call.1} parent=1 // pred_check
      _
    $region19: #{tpu_custom_call.1} parent=1 // pred_check_branch
      %25 = sbr.rel (0) target = $region21
    $region20: #{tpu_custom_call.1} parent=1 // pred_region
      _
    $region21: #{tpu_custom_call.1} parent=1 // pred_fallthru
      _
    // Predicated region
    $region22: #{tpu_custom_call.1} parent=1 // pred_check
      _
    $region23: #{tpu_custom_call.1} parent=1 // pred_check_branch
      %27 = sbr.rel (0) target = $region25
    $region24: #{tpu_custom_call.1} parent=1 // pred_region
      _
    $region25: #{tpu_custom_call.1} parent=1 // pred_fallthru
      _
    // Predicated region
    $region26: #{tpu_custom_call.1} parent=1 // pred_check
      _
    $region27: #{tpu_custom_call.1} parent=1 // pred_check_branch
      %29 = sbr.rel (0) target = $region29
    $region28: #{tpu_custom_call.1} parent=1 // pred_region
      _
    $region29: #{tpu_custom_call.1} parent=1 // pred_fallthru
      _
    // Predicated region
    $region30: #{tpu_custom_call.1} parent=1 // pred_check
      _
    $region31: #{tpu_custom_call.1} parent=1 // pred_check_branch
      %31 = sbr.rel (0) target = $region33
    $region32: #{tpu_custom_call.1} parent=1 // pred_region
      _
    $region33: #{tpu_custom_call.1} parent=1 // pred_fallthru
      _
    // Predicated region
    $region34: #{tpu_custom_call.1} parent=1 // pred_check
      _
    $region35: #{tpu_custom_call.1} parent=1 // pred_check_branch
      %33 = sbr.rel (0) target = $region37
    $region36: #{tpu_custom_call.1} parent=1 // pred_region
      _
    $region37: #{tpu_custom_call.1} parent=1 // pred_fallthru
      _
    // Predicated region
    $region38: #{tpu_custom_call.1} parent=1 // pred_check
      _
    $region39: #{tpu_custom_call.1} parent=1 // pred_check_branch
      %35 = sbr.rel (0) target = $region41
    $region40: #{tpu_custom_call.1} parent=1 // pred_region
      _
    $region41: #{tpu_custom_call.1} parent=1 // pred_fallthru
      _
    %v37 = vld [vmem:[%s0] sm:$0xff]
    %v38 = vld [vmem:[%s0 + $0x8] sm:$0xff]
    %v39 = vld [vmem:[%s0 + $0x10] sm:$0xff]
    %v40 = vld [vmem:[%s0 + $0x18] sm:$0xff]
    %v41 = vld [vmem:[%s0 + $0x20] sm:$0xff]
    %v42 = vld [vmem:[%s0 + $0x28] sm:$0xff]
    %v43 = vld [vmem:[%s0 + $0x30] sm:$0xff]
    %v44 = vld [vmem:[%s1] sm:$0xf]
    %v45 = vld [vmem:[%s1 + $0x4] sm:$0xf]
    %v46 = vld [vmem:[%s1 + $0x8] sm:$0xf]
    %v47 = vld [vmem:[%s1 + $0xc] sm:$0xf]
    %v48 = vld [vmem:[%s1 + $0x10] sm:$0xf]
    %v49 = vld [vmem:[%s1 + $0x14] sm:$0xf]
    %v50 = vld [vmem:[%s1 + $0x18] sm:$0xf]
    %v51 = vld [vmem:[%s1 + $0x1c] sm:$0xf]
    %v52 = vld [vmem:[%s1 + $0x20] sm:$0xf]
    %v53 = vld [vmem:[%s1 + $0x24] sm:$0xf]
    %v54 = vld [vmem:[%s1 + $0x28] sm:$0xf]
    %v55 = vld [vmem:[%s1 + $0x2c] sm:$0xf]
    %v56 = vld [vmem:[%s1 + $0x30] sm:$0xf]
    %v57 = vld [vmem:[%s1 + $0x34] sm:$0xf]
    %v58 = vld [vmem:[%s1 + $0x38] sm:$0xf]
    %v59 = vld [vmem:[%s1 + $0x3c] sm:$0xf]
    %v60 = vld [vmem:[%s1 + $0x40] sm:$0xf]
    %v61 = vld [vmem:[%s1 + $0x44] sm:$0xf]
    %v62 = vld [vmem:[%s1 + $0x48] sm:$0xf]
    %v63 = vld [vmem:[%s1 + $0x4c] sm:$0xf]
    %v64 = vld [vmem:[%s1 + $0x50] sm:$0xf]
    %v65 = vld [vmem:[%s1 + $0x54] sm:$0xf]
    %v66 = vld [vmem:[%s1 + $0x58] sm:$0xf]
    %v67 = vld [vmem:[%s1 + $0x5c] sm:$0xf]
    %v68 = vld [vmem:[%s1 + $0x60] sm:$0xf]
    %v69 = vld [vmem:[%s1 + $0x64] sm:$0xf]
    %v70 = vld [vmem:[%s1 + $0x68] sm:$0xf]
    %v71 = vld [vmem:[%s1 + $0x6c] sm:$0xf]
    %v72 = vld [vmem:[%s1 + $0x70] sm:$0xf]
    %v73 = vld [vmem:[%s1 + $0x74] sm:$0xf]
    %v74 = vld [vmem:[%s1 + $0x78] sm:$0xf]
    %v75 = vld [vmem:[%s1 + $0x7c] sm:$0xf]
    %v76 = vld [vmem:[%s1 + $0x80] sm:$0xf]
    %v77 = vld [vmem:[%s1 + $0x84] sm:$0xf]
    %v78 = vld [vmem:[%s1 + $0x88] sm:$0xf]
    %v79 = vld [vmem:[%s1 + $0x8c] sm:$0xf]
    %v80 = vld [vmem:[%s1 + $0x90] sm:$0xf]
    %v81 = vld [vmem:[%s1 + $0x94] sm:$0xf]
    %v82 = vld [vmem:[%s1 + $0x98] sm:$0xf]
    %v83 = vld [vmem:[%s1 + $0x9c] sm:$0xf]
    %v84 = vld [vmem:[%s1 + $0xa0] sm:$0xf]
    %v85 = vld [vmem:[%s1 + $0xa4] sm:$0xf]
    %v86 = vld [vmem:[%s1 + $0xa8] sm:$0xf]
    %v87 = vld [vmem:[%s1 + $0xac] sm:$0xf]
    %v88 = vld [vmem:[%s1 + $0xb0] sm:$0xf]
    %v89 = vld [vmem:[%s1 + $0xb4] sm:$0xf]
    %v90 = vld [vmem:[%s1 + $0xb8] sm:$0xf]
    %v91 = vld [vmem:[%s1 + $0xbc] sm:$0xf]
    %v92 = vld [vmem:[%s1 + $0xc0] sm:$0xf]
    %v93 = vld [vmem:[%s1 + $0xc4] sm:$0xf]
    %v94 = vld [vmem:[%s1 + $0xc8] sm:$0xf]
    %v95 = vld [vmem:[%s1 + $0xcc] sm:$0xf]
    %v96 = vld [vmem:[%s1 + $0xd0] sm:$0xf]
    %v97 = vld [vmem:[%s1 + $0xd4] sm:$0xf]
    %v98 = vld [vmem:[%s1 + $0xd8] sm:$0xf]
    %v99 = vld [vmem:[%s1 + $0xdc] sm:$0xf]
    %v100 = vld [vmem:[%s1 + $0xe0] sm:$0xf]
    %v101 = vld [vmem:[%s1 + $0xe4] sm:$0xf]
    %v102 = vld [vmem:[%s1 + $0xe8] sm:$0xf]
    %v103 = vld [vmem:[%s1 + $0xec] sm:$0xf]
    %v104 = vld [vmem:[%s1 + $0xf0] sm:$0xf]
    %v105 = vld [vmem:[%s1 + $0xf4] sm:$0xf]
    %v106 = vld [vmem:[%s1 + $0xf8] sm:$0xf]
    %v107 = vld [vmem:[%s1 + $0xfc] sm:$0xf]
    %v108 = vld [vmem:[%s1 + $0x100] sm:$0xf]
    %v109 = vld [vmem:[%s1 + $0x104] sm:$0xf]
    %v110 = vld [vmem:[%s1 + $0x108] sm:$0xf]
    %v111 = vld [vmem:[%s1 + $0x10c] sm:$0xf]
    %v112 = vld [vmem:[%s1 + $0x110] sm:$0xf]
    %v113 = vld [vmem:[%s1 + $0x114] sm:$0xf]
    %v114 = vld [vmem:[%s1 + $0x118] sm:$0xf]
    %v115 = vld [vmem:[%s1 + $0x11c] sm:$0xf]
    %v116 = vld [vmem:[%s1 + $0x120] sm:$0xf]
    %v117 = vld [vmem:[%s1 + $0x124] sm:$0xf]
    %v118 = vld [vmem:[%s1 + $0x128] sm:$0xf]
    %v119 = vld [vmem:[%s1 + $0x12c] sm:$0xf]
    %v120 = vld [vmem:[%s1 + $0x130] sm:$0xf]
    %v121 = vld [vmem:[%s1 + $0x134] sm:$0xf]
    %v122 = vld [vmem:[%s1 + $0x138] sm:$0xf]
    %v123 = vld [vmem:[%s1 + $0x13c] sm:$0xf]
    %v124 = vld [vmem:[%s1 + $0x140] sm:$0xf]
    %v125 = vld [vmem:[%s1 + $0x144] sm:$0xf]
    %v126 = vld [vmem:[%s1 + $0x148] sm:$0xf]
    %v127 = vld [vmem:[%s1 + $0x14c] sm:$0xf]
    %v128 = vld [vmem:[%s1 + $0x150] sm:$0xf]
    %v129 = vld [vmem:[%s1 + $0x154] sm:$0xf]
    %v130 = vld [vmem:[%s1 + $0x158] sm:$0xf]
    %v131 = vld [vmem:[%s1 + $0x15c] sm:$0xf]
    %v132 = vld [vmem:[%s1 + $0x160] sm:$0xf]
    %v133 = vld [vmem:[%s1 + $0x164] sm:$0xf]
    %v134 = vld [vmem:[%s1 + $0x168] sm:$0xf]
    %v135 = vld [vmem:[%s1 + $0x16c] sm:$0xf]
    %v136 = vld [vmem:[%s1 + $0x170] sm:$0xf]
    %v137 = vld [vmem:[%s1 + $0x174] sm:$0xf]
    %v138 = vld [vmem:[%s1 + $0x178] sm:$0xf]
    %v139 = vld [vmem:[%s1 + $0x17c] sm:$0xf]
    %v140 = vld [vmem:[%s1 + $0x180] sm:$0xf]
    %v141 = vld [vmem:[%s1 + $0x184] sm:$0xf]
    %v142 = vld [vmem:[%s9] ss:$0 sm:$0xff]
    %v143 = vpack.c.bf16 %v37, %v37
    %v144 = vpack.c.bf16 %v38, %v38
    %v145 = vpack.c.bf16 %v39, %v39
    %v146 = vpack.c.bf16 %v40, %v40
    %v147 = vpack.c.bf16 %v41, %v41
    %v148 = vpack.c.bf16 %v42, %v42
    %v149 = vpack.c.bf16 %v43, %v43
    %v248 = vunpack.c.l.b16 %v44
    %v249 = vunpack.c.l.b16 %v45
    %v250 = vunpack.c.l.b16 %v46
    %v251 = vunpack.c.l.b16 %v47
    %v252 = vunpack.c.l.b16 %v48
    %v253 = vunpack.c.l.b16 %v49
    %v254 = vunpack.c.l.b16 %v50
    %v255 = vunpack.c.l.b16 %v51
    %v256 = vunpack.c.l.b16 %v52
    %v257 = vunpack.c.l.b16 %v53
    %v258 = vunpack.c.l.b16 %v54
    %v259 = vunpack.c.l.b16 %v55
    %v260 = vunpack.c.l.b16 %v56
    %v261 = vunpack.c.l.b16 %v57
    %v262 = vunpack.c.l.b16 %v58
    %v263 = vunpack.c.l.b16 %v59
    %v264 = vunpack.c.l.b16 %v60
    %v265 = vunpack.c.l.b16 %v61
    %v266 = vunpack.c.l.b16 %v62
    %v267 = vunpack.c.l.b16 %v63
    %v268 = vunpack.c.l.b16 %v64
    %v269 = vunpack.c.l.b16 %v65
    %v270 = vunpack.c.l.b16 %v66
    %v271 = vunpack.c.l.b16 %v67
    %v272 = vunpack.c.l.b16 %v68
    %v273 = vunpack.c.l.b16 %v69
    %v274 = vunpack.c.l.b16 %v70
    %v275 = vunpack.c.l.b16 %v71
    %v276 = vunpack.c.l.b16 %v72
    %v277 = vunpack.c.l.b16 %v73
    %v278 = vunpack.c.l.b16 %v74
    %v279 = vunpack.c.l.b16 %v75
    %v280 = vunpack.c.l.b16 %v76
    %v281 = vunpack.c.l.b16 %v77
    %v282 = vunpack.c.l.b16 %v78
    %v283 = vunpack.c.l.b16 %v79
    %v284 = vunpack.c.l.b16 %v80
    %v285 = vunpack.c.l.b16 %v81
    %v286 = vunpack.c.l.b16 %v82
    %v287 = vunpack.c.l.b16 %v83
    %v288 = vunpack.c.l.b16 %v84
    %v289 = vunpack.c.l.b16 %v85
    %v290 = vunpack.c.l.b16 %v86
    %v291 = vunpack.c.l.b16 %v87
    %v292 = vunpack.c.l.b16 %v88
    %v293 = vunpack.c.l.b16 %v89
    %v294 = vunpack.c.l.b16 %v90
    %v295 = vunpack.c.l.b16 %v91
    %v296 = vunpack.c.l.b16 %v92
    %v297 = vunpack.c.l.b16 %v93
    %v298 = vunpack.c.l.b16 %v94
    %v299 = vunpack.c.l.b16 %v95
    %v300 = vunpack.c.l.b16 %v96
    %v301 = vunpack.c.l.b16 %v97
    %v302 = vunpack.c.l.b16 %v98
    %v303 = vunpack.c.l.b16 %v99
    %v304 = vunpack.c.l.b16 %v100
    %v305 = vunpack.c.l.b16 %v101
    %v306 = vunpack.c.l.b16 %v102
    %v307 = vunpack.c.l.b16 %v103
    %v308 = vunpack.c.l.b16 %v104
    %v309 = vunpack.c.l.b16 %v105
    %v310 = vunpack.c.l.b16 %v106
    %v311 = vunpack.c.l.b16 %v107
    %v312 = vunpack.c.l.b16 %v108
    %v313 = vunpack.c.l.b16 %v109
    %v314 = vunpack.c.l.b16 %v110
    %v315 = vunpack.c.l.b16 %v111
    %v316 = vunpack.c.l.b16 %v112
    %v317 = vunpack.c.l.b16 %v113
    %v318 = vunpack.c.l.b16 %v114
    %v319 = vunpack.c.l.b16 %v115
    %v320 = vunpack.c.l.b16 %v116
    %v321 = vunpack.c.l.b16 %v117
    %v322 = vunpack.c.l.b16 %v118
    %v323 = vunpack.c.l.b16 %v119
    %v324 = vunpack.c.l.b16 %v120
    %v325 = vunpack.c.l.b16 %v121
    %v326 = vunpack.c.l.b16 %v122
    %v327 = vunpack.c.l.b16 %v123
    %v328 = vunpack.c.l.b16 %v124
    %v329 = vunpack.c.l.b16 %v125
    %v330 = vunpack.c.l.b16 %v126
    %v331 = vunpack.c.l.b16 %v127
    %v332 = vunpack.c.l.b16 %v128
    %v333 = vunpack.c.l.b16 %v129
    %v334 = vunpack.c.l.b16 %v130
    %v335 = vunpack.c.l.b16 %v131
    %v336 = vunpack.c.l.b16 %v132
    %v337 = vunpack.c.l.b16 %v133
    %v338 = vunpack.c.l.b16 %v134
    %v339 = vunpack.c.l.b16 %v135
    %v340 = vunpack.c.l.b16 %v136
    %v341 = vunpack.c.l.b16 %v137
    %v342 = vunpack.c.l.b16 %v138
    %v343 = vunpack.c.l.b16 %v139
    %v344 = vunpack.c.l.b16 %v140
    %v345 = vunpack.c.l.b16 %v141
    %v346 = vpack.c.b16 %v249, %v248
    %v347 = vpack.c.b16 %v251, %v250
    %v348 = vpack.c.b16 %v253, %v252
    %v349 = vpack.c.b16 %v255, %v254
    %v350 = vpack.c.b16 %v257, %v256
    %v351 = vpack.c.b16 %v259, %v258
    %v352 = vpack.c.b16 %v261, %v260
    %v353 = vpack.c.b16 %v263, %v262
    %v354 = vpack.c.b16 %v265, %v264
    %v355 = vpack.c.b16 %v267, %v266
    %v356 = vpack.c.b16 %v269, %v268
    %v357 = vpack.c.b16 %v271, %v270
    %v358 = vpack.c.b16 %v273, %v272
    %v359 = vpack.c.b16 %v275, %v274
    %v360 = vpack.c.b16 %v277, %v276
    %v361 = vpack.c.b16 %v279, %v278
    %v362 = vpack.c.b16 %v281, %v280
    %v363 = vpack.c.b16 %v283, %v282
    %v364 = vpack.c.b16 %v285, %v284
    %v365 = vpack.c.b16 %v287, %v286
    %v366 = vpack.c.b16 %v289, %v288
    %v367 = vpack.c.b16 %v291, %v290
    %v368 = vpack.c.b16 %v293, %v292
    %v369 = vpack.c.b16 %v295, %v294
    %v370 = vpack.c.b16 %v297, %v296
    %v371 = vpack.c.b16 %v299, %v298
    %v372 = vpack.c.b16 %v301, %v300
    %v373 = vpack.c.b16 %v303, %v302
    %v374 = vpack.c.b16 %v305, %v304
    %v375 = vpack.c.b16 %v307, %v306
    %v376 = vpack.c.b16 %v309, %v308
    %v377 = vpack.c.b16 %v311, %v310
    %v378 = vpack.c.b16 %v313, %v312
    %v379 = vpack.c.b16 %v315, %v314
    %v380 = vpack.c.b16 %v317, %v316
    %v381 = vpack.c.b16 %v319, %v318
    %v382 = vpack.c.b16 %v321, %v320
    %v383 = vpack.c.b16 %v323, %v322
    %v384 = vpack.c.b16 %v325, %v324
    %v385 = vpack.c.b16 %v327, %v326
    %v386 = vpack.c.b16 %v329, %v328
    %v387 = vpack.c.b16 %v331, %v330
    %v388 = vpack.c.b16 %v333, %v332
    %v389 = vpack.c.b16 %v335, %v334
    %v390 = vpack.c.b16 %v337, %v336
    %v391 = vpack.c.b16 %v339, %v338
    %v392 = vpack.c.b16 %v341, %v340
    %v393 = vpack.c.b16 %v343, %v342
    %v394 = vpack.c.b16 %v345, %v344
    %vm444 = vcmask 130048
    %v446 = vsel %vm444, %v149, 0
    %448 = vmatprep.subr.bf16.mxu0 0
    %449 = vmatpush1.bf16.msra.mxu0 %v346
    %450 = vmatprep.subr.bf16.mxu0 0
    %451 = vmatpush1.bf16.msra.mxu0 %v347
    %452 = vmatprep.subr.bf16.mxu0 0
    %453 = vmatpush1.bf16.msra.mxu0 %v348
    %454 = vmatprep.subr.bf16.mxu0 0
    %455 = vmatpush1.bf16.msra.mxu0 %v349
    %456 = vmatprep.subr.bf16.mxu0 0
    %457 = vmatpush1.bf16.msra.mxu0 %v350
    %458 = vmatprep.subr.bf16.mxu0 0
    %459 = vmatpush1.bf16.msra.mxu0 %v351
    %460 = vmatprep.subr.bf16.mxu0 0
    %461 = vmatpush1.bf16.msra.mxu0 %v352
    %462 = vmatprep.subr.bf16.mxu0 0
    %463 = vmatpush1.bf16.msra.mxu0 %v353
    %464 = vmatprep.subr.bf16.mxu0 0
    %465 = vmatpush1.bf16.msra.mxu0 %v354
    %466 = vmatprep.subr.bf16.mxu0 0
    %467 = vmatpush1.bf16.msra.mxu0 %v355
    %468 = vmatprep.subr.bf16.mxu0 0
    %469 = vmatpush1.bf16.msra.mxu0 %v356
    %470 = vmatprep.subr.bf16.mxu0 0
    %471 = vmatpush1.bf16.msra.mxu0 %v357
    %472 = vmatprep.subr.bf16.mxu0 0
    %473 = vmatpush1.bf16.msra.mxu0 %v358
    %474 = vmatprep.subr.bf16.mxu0 0
    %475 = vmatpush1.bf16.msra.mxu0 %v359
    %476 = vmatprep.subr.bf16.mxu0 0
    %477 = vmatpush1.bf16.msra.mxu0 %v360
    %478 = vmatprep.subr.bf16.mxu0 0
    %479 = vmatpush1.bf16.msra.mxu0 %v361
    %480 = vmatprep.mubr.bf16.mxu0 %v144
    %481 = vmatmul.mubr.bf16.gmra.mrb[0].mxu0 %v143
    %v482 = vpop.f32.mrb[0].mxu0
    %v483 = vadd.f32 %v142, %v482
    %v484 = vpop.f32.mrb[0].mxu0
    %v485 = vpop.f32.mrb[0].mxu0
    %v486 = vpop.f32.mrb[0].mxu0
    %487 = vdwg.mxu0
    %488 = vmatprep.subr.bf16.mxu0 0
    %489 = vmatpush1.bf16.msra.mxu0 %v362
    %490 = vmatprep.subr.bf16.mxu0 0
    %491 = vmatpush1.bf16.msra.mxu0 %v363
    %492 = vmatprep.subr.bf16.mxu0 0
    %493 = vmatpush1.bf16.msra.mxu0 %v364
    %494 = vmatprep.subr.bf16.mxu0 0
    %495 = vmatpush1.bf16.msra.mxu0 %v365
    %496 = vmatprep.subr.bf16.mxu0 0
    %497 = vmatpush1.bf16.msra.mxu0 %v366
    %498 = vmatprep.subr.bf16.mxu0 0
    %499 = vmatpush1.bf16.msra.mxu0 %v367
    %500 = vmatprep.subr.bf16.mxu0 0
    %501 = vmatpush1.bf16.msra.mxu0 %v368
    %502 = vmatprep.subr.bf16.mxu0 0
    %503 = vmatpush1.bf16.msra.mxu0 %v369
    %504 = vmatprep.subr.bf16.mxu0 0
    %505 = vmatpush1.bf16.msra.mxu0 %v370
    %506 = vmatprep.subr.bf16.mxu0 0
    %507 = vmatpush1.bf16.msra.mxu0 %v371
    %508 = vmatprep.subr.bf16.mxu0 0
    %509 = vmatpush1.bf16.msra.mxu0 %v372
    %510 = vmatprep.subr.bf16.mxu0 0
    %511 = vmatpush1.bf16.msra.mxu0 %v373
    %512 = vmatprep.subr.bf16.mxu0 0
    %513 = vmatpush1.bf16.msra.mxu0 %v374
    %514 = vmatprep.subr.bf16.mxu0 0
    %515 = vmatpush1.bf16.msra.mxu0 %v375
    %516 = vmatprep.subr.bf16.mxu0 0
    %517 = vmatpush1.bf16.msra.mxu0 %v376
    %518 = vmatprep.subr.bf16.mxu0 0
    %519 = vmatpush1.bf16.msra.mxu0 %v377
    %520 = vmatprep.mubr.bf16.mxu0 %v146
    %521 = vmatmul.mubr.bf16.gmra.mrb[0].mxu0 %v145
    %v522 = vpop.f32.mrb[0].mxu0
    %v523 = vadd.f32 %v483, %v522
    %v524 = vpop.f32.mrb[0].mxu0
    %v525 = vpop.f32.mrb[0].mxu0
    %v526 = vpop.f32.mrb[0].mxu0
    %527 = vdwg.mxu0
    %528 = vmatprep.subr.bf16.mxu0 0
    %529 = vmatpush1.bf16.msra.mxu0 %v378
    %530 = vmatprep.subr.bf16.mxu0 0
    %531 = vmatpush1.bf16.msra.mxu0 %v379
    %532 = vmatprep.subr.bf16.mxu0 0
    %533 = vmatpush1.bf16.msra.mxu0 %v380
    %534 = vmatprep.subr.bf16.mxu0 0
    %535 = vmatpush1.bf16.msra.mxu0 %v381
    %536 = vmatprep.subr.bf16.mxu0 0
    %537 = vmatpush1.bf16.msra.mxu0 %v382
    %538 = vmatprep.subr.bf16.mxu0 0
    %539 = vmatpush1.bf16.msra.mxu0 %v383
    %540 = vmatprep.subr.bf16.mxu0 0
    %541 = vmatpush1.bf16.msra.mxu0 %v384
    %542 = vmatprep.subr.bf16.mxu0 0
    %543 = vmatpush1.bf16.msra.mxu0 %v385
    %544 = vmatprep.subr.bf16.mxu0 0
    %545 = vmatpush1.bf16.msra.mxu0 %v386
    %546 = vmatprep.subr.bf16.mxu0 0
    %547 = vmatpush1.bf16.msra.mxu0 %v387
    %548 = vmatprep.subr.bf16.mxu0 0
    %549 = vmatpush1.bf16.msra.mxu0 %v388
    %550 = vmatprep.subr.bf16.mxu0 0
    %551 = vmatpush1.bf16.msra.mxu0 %v389
    %552 = vmatprep.subr.bf16.mxu0 0
    %553 = vmatpush1.bf16.msra.mxu0 %v390
    %554 = vmatprep.subr.bf16.mxu0 0
    %555 = vmatpush1.bf16.msra.mxu0 %v391
    %556 = vmatprep.subr.bf16.mxu0 0
    %557 = vmatpush1.bf16.msra.mxu0 %v392
    %558 = vmatprep.subr.bf16.mxu0 0
    %559 = vmatpush1.bf16.msra.mxu0 %v393
    %560 = vmatprep.mubr.bf16.mxu0 %v148
    %561 = vmatmul.mubr.bf16.gmra.mrb[0].mxu0 %v147
    %v562 = vpop.f32.mrb[0].mxu0
    %v563 = vadd.f32 %v523, %v562
    %v564 = vpop.f32.mrb[0].mxu0
    %v565 = vpop.f32.mrb[0].mxu0
    %v566 = vpop.f32.mrb[0].mxu0
    %567 = vdwg.mxu0
    %568 = vmatprep.subr.bf16.mxu0 0
    %569 = vmatpush1.bf16.msra.mxu0 %v394
    %570 = vmatprep.subr.bf16.mxu0 0
    %571 = vmatpush1.bf16.msra.mxu0 0
    %572 = vmatprep.subr.bf16.mxu0 0
    %573 = vmatpush1.bf16.msra.mxu0 0
    %574 = vmatprep.subr.bf16.mxu0 0
    %575 = vmatpush1.bf16.msra.mxu0 0
    %576 = vmatprep.subr.bf16.mxu0 0
    %577 = vmatpush1.bf16.msra.mxu0 0
    %578 = vmatprep.subr.bf16.mxu0 0
    %579 = vmatpush1.bf16.msra.mxu0 0
    %580 = vmatprep.subr.bf16.mxu0 0
    %581 = vmatpush1.bf16.msra.mxu0 0
    %582 = vmatprep.subr.bf16.mxu0 0
    %583 = vmatpush1.bf16.msra.mxu0 0
    %584 = vmatprep.subr.bf16.mxu0 0
    %585 = vmatpush1.bf16.msra.mxu0 0
    %586 = vmatprep.subr.bf16.mxu0 0
    %587 = vmatpush1.bf16.msra.mxu0 0
    %588 = vmatprep.subr.bf16.mxu0 0
    %589 = vmatpush1.bf16.msra.mxu0 0
    %590 = vmatprep.subr.bf16.mxu0 0
    %591 = vmatpush1.bf16.msra.mxu0 0
    %592 = vmatprep.subr.bf16.mxu0 0
    %593 = vmatpush1.bf16.msra.mxu0 0
    %594 = vmatprep.subr.bf16.mxu0 0
    %595 = vmatpush1.bf16.msra.mxu0 0
    %596 = vmatprep.subr.bf16.mxu0 0
    %597 = vmatpush1.bf16.msra.mxu0 0
    %598 = vmatprep.subr.bf16.mxu0 0
    %599 = vmatpush1.bf16.msra.mxu0 0
    %600 = vmatprep.mubr.bf16.mxu0 0
    %601 = vmatmul.mubr.bf16.gmra.mrb[0].mxu0 %v446
    %v602 = vpop.f32.mrb[0].mxu0
    %v603 = vadd.f32 %v563, %v602
    %v604 = vpop.f32.mrb[0].mxu0
    %v605 = vpop.f32.mrb[0].mxu0
    %v606 = vpop.f32.mrb[0].mxu0
    %607 = vdwg.mxu0
    %v608 = vmax.f32 %v603, 0.0
    %v609 = vld [vmem:[%s2] sm:$0xf]
    %v610 = vld [vmem:[%s2 + $0x4] sm:$0xf]
    %v611 = vld [vmem:[%s2 + $0x8] sm:$0xf]
    %v612 = vld [vmem:[%s2 + $0xc] sm:$0xf]
    %v613 = vld [vmem:[%s2 + $0x10] sm:$0xf]
    %v614 = vld [vmem:[%s2 + $0x14] sm:$0xf]
    %v615 = vld [vmem:[%s2 + $0x18] sm:$0xf]
    %v616 = vld [vmem:[%s2 + $0x1c] sm:$0xf]
    %v617 = vld [vmem:[%s2 + $0x20] sm:$0xf]
    %v618 = vld [vmem:[%s2 + $0x24] sm:$0xf]
    %v619 = vld [vmem:[%s2 + $0x28] sm:$0xf]
    %v620 = vld [vmem:[%s2 + $0x2c] sm:$0xf]
    %v621 = vld [vmem:[%s2 + $0x30] sm:$0xf]
    %v622 = vld [vmem:[%s2 + $0x34] sm:$0xf]
    %v623 = vld [vmem:[%s2 + $0x38] sm:$0xf]
    %v624 = vld [vmem:[%s2 + $0x3c] sm:$0xf]
    %v625 = vld [vmem:[%s9 + $0x1] ss:$0 sm:$0xff]
    %v626 = vpack.c.bf16 %v608, %v608
    %v643 = vunpack.c.l.b16 %v609
    %v644 = vunpack.c.l.b16 %v610
    %v645 = vunpack.c.l.b16 %v611
    %v646 = vunpack.c.l.b16 %v612
    %v647 = vunpack.c.l.b16 %v613
    %v648 = vunpack.c.l.b16 %v614
    %v649 = vunpack.c.l.b16 %v615
    %v650 = vunpack.c.l.b16 %v616
    %v651 = vunpack.c.l.b16 %v617
    %v652 = vunpack.c.l.b16 %v618
    %v653 = vunpack.c.l.b16 %v619
    %v654 = vunpack.c.l.b16 %v620
    %v655 = vunpack.c.l.b16 %v621
    %v656 = vunpack.c.l.b16 %v622
    %v657 = vunpack.c.l.b16 %v623
    %v658 = vunpack.c.l.b16 %v624
    %v659 = vpack.c.b16 %v644, %v643
    %v660 = vpack.c.b16 %v646, %v645
    %v661 = vpack.c.b16 %v648, %v647
    %v662 = vpack.c.b16 %v650, %v649
    %v663 = vpack.c.b16 %v652, %v651
    %v664 = vpack.c.b16 %v654, %v653
    %v665 = vpack.c.b16 %v656, %v655
    %v666 = vpack.c.b16 %v658, %v657
    %675 = vmatprep.subr.bf16.mxu0 0
    %676 = vmatpush1.bf16.msra.mxu0 %v659
    %677 = vmatprep.subr.bf16.mxu0 0
    %678 = vmatpush1.bf16.msra.mxu0 %v660
    %679 = vmatprep.subr.bf16.mxu0 0
    %680 = vmatpush1.bf16.msra.mxu0 %v661
    %681 = vmatprep.subr.bf16.mxu0 0
    %682 = vmatpush1.bf16.msra.mxu0 %v662
    %683 = vmatprep.subr.bf16.mxu0 0
    %684 = vmatpush1.bf16.msra.mxu0 %v663
    %685 = vmatprep.subr.bf16.mxu0 0
    %686 = vmatpush1.bf16.msra.mxu0 %v664
    %687 = vmatprep.subr.bf16.mxu0 0
    %688 = vmatpush1.bf16.msra.mxu0 %v665
    %689 = vmatprep.subr.bf16.mxu0 0
    %690 = vmatpush1.bf16.msra.mxu0 %v666
    %691 = vmatprep.subr.bf16.mxu0 0
    %692 = vmatpush1.bf16.msra.mxu0 0
    %693 = vmatprep.subr.bf16.mxu0 0
    %694 = vmatpush1.bf16.msra.mxu0 0
    %695 = vmatprep.subr.bf16.mxu0 0
    %696 = vmatpush1.bf16.msra.mxu0 0
    %697 = vmatprep.subr.bf16.mxu0 0
    %698 = vmatpush1.bf16.msra.mxu0 0
    %699 = vmatprep.subr.bf16.mxu0 0
    %700 = vmatpush1.bf16.msra.mxu0 0
    %701 = vmatprep.subr.bf16.mxu0 0
    %702 = vmatpush1.bf16.msra.mxu0 0
    %703 = vmatprep.subr.bf16.mxu0 0
    %704 = vmatpush1.bf16.msra.mxu0 0
    %705 = vmatprep.subr.bf16.mxu0 0
    %706 = vmatpush1.bf16.msra.mxu0 0
    %707 = vmatprep.mubr.bf16.mxu0 0
    %708 = vmatmul.mubr.bf16.gmra.mrb[0].mxu0 %v626
    %v709 = vpop.f32.mrb[0].mxu0
    %v710 = vadd.f32 %v625, %v709
    %v711 = vpop.f32.mrb[0].mxu0
    %v712 = vpop.f32.mrb[0].mxu0
    %v713 = vpop.f32.mrb[0].mxu0
    %714 = vdwg.mxu0
    %v715 = vmax.f32 %v710, 0.0
    %v716 = vld [vmem:[%s3] sm:$0xf]
    %v717 = vld [vmem:[%s3 + $0x4] sm:$0xf]
    %v718 = vld [vmem:[%s3 + $0x8] sm:$0xf]
    %v719 = vld [vmem:[%s3 + $0xc] sm:$0xf]
    %v720 = vld [vmem:[%s3 + $0x10] sm:$0xf]
    %v721 = vld [vmem:[%s3 + $0x14] sm:$0xf]
    %v722 = vld [vmem:[%s3 + $0x18] sm:$0xf]
    %v723 = vld [vmem:[%s3 + $0x1c] sm:$0xf]
    %v724 = vld [vmem:[%s9 + $0x2] ss:$0 sm:$0xff]
    %v725 = vpack.c.bf16 %v715, %v715
    %v734 = vunpack.c.l.b16 %v716
    %v735 = vunpack.c.l.b16 %v717
    %v736 = vunpack.c.l.b16 %v718
    %v737 = vunpack.c.l.b16 %v719
    %v738 = vunpack.c.l.b16 %v720
    %v739 = vunpack.c.l.b16 %v721
    %v740 = vunpack.c.l.b16 %v722
    %v741 = vunpack.c.l.b16 %v723
    %v742 = vpack.c.b16 %v735, %v734
    %v743 = vpack.c.b16 %v737, %v736
    %v744 = vpack.c.b16 %v739, %v738
    %v745 = vpack.c.b16 %v741, %v740
    %vm750 = vcmask 523264
    %v752 = vsel %vm750, %v725, 0
    %754 = vmatprep.subr.bf16.mxu0 0
    %755 = vmatpush1.bf16.msra.mxu0 %v742
    %756 = vmatprep.subr.bf16.mxu0 0
    %757 = vmatpush1.bf16.msra.mxu0 %v743
    %758 = vmatprep.subr.bf16.mxu0 0
    %759 = vmatpush1.bf16.msra.mxu0 %v744
    %760 = vmatprep.subr.bf16.mxu0 0
    %761 = vmatpush1.bf16.msra.mxu0 %v745
    %762 = vmatprep.subr.bf16.mxu0 0
    %763 = vmatpush1.bf16.msra.mxu0 0
    %764 = vmatprep.subr.bf16.mxu0 0
    %765 = vmatpush1.bf16.msra.mxu0 0
    %766 = vmatprep.subr.bf16.mxu0 0
    %767 = vmatpush1.bf16.msra.mxu0 0
    %768 = vmatprep.subr.bf16.mxu0 0
    %769 = vmatpush1.bf16.msra.mxu0 0
    %770 = vmatprep.subr.bf16.mxu0 0
    %771 = vmatpush1.bf16.msra.mxu0 0
    %772 = vmatprep.subr.bf16.mxu0 0
    %773 = vmatpush1.bf16.msra.mxu0 0
    %774 = vmatprep.subr.bf16.mxu0 0
    %775 = vmatpush1.bf16.msra.mxu0 0
    %776 = vmatprep.subr.bf16.mxu0 0
    %777 = vmatpush1.bf16.msra.mxu0 0
    %778 = vmatprep.subr.bf16.mxu0 0
    %779 = vmatpush1.bf16.msra.mxu0 0
    %780 = vmatprep.subr.bf16.mxu0 0
    %781 = vmatpush1.bf16.msra.mxu0 0
    %782 = vmatprep.subr.bf16.mxu0 0
    %783 = vmatpush1.bf16.msra.mxu0 0
    %784 = vmatprep.subr.bf16.mxu0 0
    %785 = vmatpush1.bf16.msra.mxu0 0
    %786 = vmatprep.mubr.bf16.mxu0 0
    %787 = vmatmul.mubr.bf16.gmra.mrb[0].mxu0 %v752
    %v788 = vpop.f32.mrb[0].mxu0
    %v789 = vadd.f32 %v724, %v788
    %v790 = vpop.f32.mrb[0].mxu0
    %v791 = vpop.f32.mrb[0].mxu0
    %v792 = vpop.f32.mrb[0].mxu0
    %793 = vdwg.mxu0
    %v794 = vmax.f32 %v789, 0.0
    %v795 = vld [vmem:[%s4] sm:$0xf]
    %v796 = vld [vmem:[%s4 + $0x4] sm:$0x3]
    %v797 = vld [vmem:[%s9 + $0x3] ss:$0 sm:$0xff]
    %v798 = vpack.c.bf16 %v794, %v794
    %v801 = vunpack.c.l.b16 %v795
    %v802 = vunpack.c.l.b16 %v796
    %v803 = vpack.c.b16 %v802, %v801
    %vm804 = vcmask 97280
    %v806 = vsel %vm804, %v798, 0
    %vm808 = vcmask 1045504
    %v810 = vsel %vm808, %v803, 0
    %812 = vmatprep.subr.bf16.mxu0 0
    %813 = vmatpush1.bf16.msra.mxu0 %v810
    %814 = vmatprep.subr.bf16.mxu0 0
    %815 = vmatpush1.bf16.msra.mxu0 0
    %816 = vmatprep.subr.bf16.mxu0 0
    %817 = vmatpush1.bf16.msra.mxu0 0
    %818 = vmatprep.subr.bf16.mxu0 0
    %819 = vmatpush1.bf16.msra.mxu0 0
    %820 = vmatprep.subr.bf16.mxu0 0
    %821 = vmatpush1.bf16.msra.mxu0 0
    %822 = vmatprep.subr.bf16.mxu0 0
    %823 = vmatpush1.bf16.msra.mxu0 0
    %824 = vmatprep.subr.bf16.mxu0 0
    %825 = vmatpush1.bf16.msra.mxu0 0
    %826 = vmatprep.subr.bf16.mxu0 0
    %827 = vmatpush1.bf16.msra.mxu0 0
    %828 = vmatprep.subr.bf16.mxu0 0
    %829 = vmatpush1.bf16.msra.mxu0 0
    %830 = vmatprep.subr.bf16.mxu0 0
    %831 = vmatpush1.bf16.msra.mxu0 0
    %832 = vmatprep.subr.bf16.mxu0 0
    %833 = vmatpush1.bf16.msra.mxu0 0
    %834 = vmatprep.subr.bf16.mxu0 0
    %835 = vmatpush1.bf16.msra.mxu0 0
    %836 = vmatprep.subr.bf16.mxu0 0
    %837 = vmatpush1.bf16.msra.mxu0 0
    %838 = vmatprep.subr.bf16.mxu0 0
    %839 = vmatpush1.bf16.msra.mxu0 0
    %840 = vmatprep.subr.bf16.mxu0 0
    %841 = vmatpush1.bf16.msra.mxu0 0
    %842 = vmatprep.subr.bf16.mxu0 0
    %843 = vmatpush1.bf16.msra.mxu0 0
    %844 = vmatprep.mubr.bf16.mxu0 0
    %845 = vmatmul.mubr.bf16.gmra.mrb[0].mxu0 %v806
    %v846 = vpop.f32.mrb[0].mxu0
    %v847 = vadd.f32 %v797, %v846
    %v848 = vpop.f32.mrb[0].mxu0
    %v849 = vpop.f32.mrb[0].mxu0
    %v850 = vpop.f32.mrb[0].mxu0
    %851 = vdwg.mxu0
    %v852 = vld [vmem:[%s5] sm:$0x3]
    %v853 = vld [vmem:[%s9 + $0x4] ss:$0 sm:$0xff]
    %v854 = vpack.c.bf16 %v847, %v847
    %vm855 = vcmask 23552
    %v857 = vsel %vm855, %v854, 0
    %vm859 = vcmask 1040384
    %vm860 = vcmask 1041408
    %v861 = vsel %vm859, 4294967295, 65535
    %v862 = vsel %vm860, %v861, 0
    %v864 = vand.u32 %v852, %v862
    %866 = vmatprep.subr.bf16.mxu0 0
    %867 = vmatpush1.bf16.msra.mxu0 %v864
    %868 = vmatprep.subr.bf16.mxu0 0
    %869 = vmatpush1.bf16.msra.mxu0 0
    %870 = vmatprep.subr.bf16.mxu0 0
    %871 = vmatpush1.bf16.msra.mxu0 0
    %872 = vmatprep.subr.bf16.mxu0 0
    %873 = vmatpush1.bf16.msra.mxu0 0
    %874 = vmatprep.subr.bf16.mxu0 0
    %875 = vmatpush1.bf16.msra.mxu0 0
    %876 = vmatprep.subr.bf16.mxu0 0
    %877 = vmatpush1.bf16.msra.mxu0 0
    %878 = vmatprep.subr.bf16.mxu0 0
    %879 = vmatpush1.bf16.msra.mxu0 0
    %880 = vmatprep.subr.bf16.mxu0 0
    %881 = vmatpush1.bf16.msra.mxu0 0
    %882 = vmatprep.subr.bf16.mxu0 0
    %883 = vmatpush1.bf16.msra.mxu0 0
    %884 = vmatprep.subr.bf16.mxu0 0
    %885 = vmatpush1.bf16.msra.mxu0 0
    %886 = vmatprep.subr.bf16.mxu0 0
    %887 = vmatpush1.bf16.msra.mxu0 0
    %888 = vmatprep.subr.bf16.mxu0 0
    %889 = vmatpush1.bf16.msra.mxu0 0
    %890 = vmatprep.subr.bf16.mxu0 0
    %891 = vmatpush1.bf16.msra.mxu0 0
    %892 = vmatprep.subr.bf16.mxu0 0
    %893 = vmatpush1.bf16.msra.mxu0 0
    %894 = vmatprep.subr.bf16.mxu0 0
    %895 = vmatpush1.bf16.msra.mxu0 0
    %896 = vmatprep.subr.bf16.mxu0 0
    %897 = vmatpush1.bf16.msra.mxu0 0
    %898 = vmatprep.mubr.bf16.mxu0 0
    %899 = vmatmul.mubr.bf16.gmra.mrb[0].mxu0 %v857
    %v900 = vpop.f32.mrb[0].mxu0
    %v901 = vadd.f32 %v853, %v900
    %v902 = vpop.f32.mrb[0].mxu0
    %v903 = vpop.f32.mrb[0].mxu0
    %v904 = vpop.f32.mrb[0].mxu0
    %905 = vdwg.mxu0
    %v906 = vmax.f32 %v901, 0.0
    %v907 = vld [vmem:[%s6] sm:$0xf]
    %v908 = vld [vmem:[%s6 + $0x4] sm:$0x3]
    %v909 = vld [vmem:[%s9 + $0x5] ss:$0 sm:$0xff]
    %v910 = vpack.c.bf16 %v906, %v906
    %v913 = vunpack.c.l.b16 %v907
    %v914 = vunpack.c.l.b16 %v908
    %v915 = vpack.c.b16 %v914, %v913
    %v917 = vsel %vm804, %v910, 0
    %v920 = vsel %vm808, %v915, 0
    %922 = vmatprep.subr.bf16.mxu0 0
    %923 = vmatpush1.bf16.msra.mxu0 %v920
    %924 = vmatprep.subr.bf16.mxu0 0
    %925 = vmatpush1.bf16.msra.mxu0 0
    %926 = vmatprep.subr.bf16.mxu0 0
    %927 = vmatpush1.bf16.msra.mxu0 0
    %928 = vmatprep.subr.bf16.mxu0 0
    %929 = vmatpush1.bf16.msra.mxu0 0
    %930 = vmatprep.subr.bf16.mxu0 0
    %931 = vmatpush1.bf16.msra.mxu0 0
    %932 = vmatprep.subr.bf16.mxu0 0
    %933 = vmatpush1.bf16.msra.mxu0 0
    %934 = vmatprep.subr.bf16.mxu0 0
    %935 = vmatpush1.bf16.msra.mxu0 0
    %936 = vmatprep.subr.bf16.mxu0 0
    %937 = vmatpush1.bf16.msra.mxu0 0
    %938 = vmatprep.subr.bf16.mxu0 0
    %939 = vmatpush1.bf16.msra.mxu0 0
    %940 = vmatprep.subr.bf16.mxu0 0
    %941 = vmatpush1.bf16.msra.mxu0 0
    %942 = vmatprep.subr.bf16.mxu0 0
    %943 = vmatpush1.bf16.msra.mxu0 0
    %944 = vmatprep.subr.bf16.mxu0 0
    %945 = vmatpush1.bf16.msra.mxu0 0
    %946 = vmatprep.subr.bf16.mxu0 0
    %947 = vmatpush1.bf16.msra.mxu0 0
    %948 = vmatprep.subr.bf16.mxu0 0
    %949 = vmatpush1.bf16.msra.mxu0 0
    %950 = vmatprep.subr.bf16.mxu0 0
    %951 = vmatpush1.bf16.msra.mxu0 0
    %952 = vmatprep.subr.bf16.mxu0 0
    %953 = vmatpush1.bf16.msra.mxu0 0
    %954 = vmatprep.mubr.bf16.mxu0 0
    %955 = vmatmul.mubr.bf16.gmra.mrb[0].mxu0 %v917
    %v956 = vpop.f32.mrb[0].mxu0
    %v957 = vadd.f32 %v909, %v956
    %v958 = vpop.f32.mrb[0].mxu0
    %v959 = vpop.f32.mrb[0].mxu0
    %v960 = vpop.f32.mrb[0].mxu0
    %961 = vdwg.mxu0
    %v962 = vmax.f32 %v957, 0.0
    %v963 = vld [vmem:[%s7] sm:$0xf]
    %v964 = vld [vmem:[%s7 + $0x4] sm:$0xf]
    %v965 = vld [vmem:[%s7 + $0x8] sm:$0xf]
    %v966 = vld [vmem:[%s7 + $0xc] sm:$0xf]
    %v967 = vld [vmem:[%s7 + $0x10] sm:$0xf]
    %v968 = vld [vmem:[%s7 + $0x14] sm:$0xf]
    %v969 = vld [vmem:[%s7 + $0x18] sm:$0xf]
    %v970 = vld [vmem:[%s7 + $0x1c] sm:$0xf]
    %v971 = vld [vmem:[%s9 + $0x6] ss:$0 sm:$0xff]
    %v972 = vpack.c.bf16 %v962, %v962
    %v981 = vunpack.c.l.b16 %v963
    %v982 = vunpack.c.l.b16 %v964
    %v983 = vunpack.c.l.b16 %v965
    %v984 = vunpack.c.l.b16 %v966
    %v985 = vunpack.c.l.b16 %v967
    %v986 = vunpack.c.l.b16 %v968
    %v987 = vunpack.c.l.b16 %v969
    %v988 = vunpack.c.l.b16 %v970
    %v989 = vpack.c.b16 %v982, %v981
    %v990 = vpack.c.b16 %v984, %v983
    %v991 = vpack.c.b16 %v986, %v985
    %v992 = vpack.c.b16 %v988, %v987
    %v998 = vsel %vm750, %v972, 0
    %1000 = vmatprep.subr.bf16.mxu0 0
    %1001 = vmatpush1.bf16.msra.mxu0 %v989
    %1002 = vmatprep.subr.bf16.mxu0 0
    %1003 = vmatpush1.bf16.msra.mxu0 %v990
    %1004 = vmatprep.subr.bf16.mxu0 0
    %1005 = vmatpush1.bf16.msra.mxu0 %v991
    %1006 = vmatprep.subr.bf16.mxu0 0
    %1007 = vmatpush1.bf16.msra.mxu0 %v992
    %1008 = vmatprep.subr.bf16.mxu0 0
    %1009 = vmatpush1.bf16.msra.mxu0 0
    %1010 = vmatprep.subr.bf16.mxu0 0
    %1011 = vmatpush1.bf16.msra.mxu0 0
    %1012 = vmatprep.subr.bf16.mxu0 0
    %1013 = vmatpush1.bf16.msra.mxu0 0
    %1014 = vmatprep.subr.bf16.mxu0 0
    %1015 = vmatpush1.bf16.msra.mxu0 0
    %1016 = vmatprep.subr.bf16.mxu0 0
    %1017 = vmatpush1.bf16.msra.mxu0 0
    %1018 = vmatprep.subr.bf16.mxu0 0
    %1019 = vmatpush1.bf16.msra.mxu0 0
    %1020 = vmatprep.subr.bf16.mxu0 0
    %1021 = vmatpush1.bf16.msra.mxu0 0
    %1022 = vmatprep.subr.bf16.mxu0 0
    %1023 = vmatpush1.bf16.msra.mxu0 0
    %1024 = vmatprep.subr.bf16.mxu0 0
    %1025 = vmatpush1.bf16.msra.mxu0 0
    %1026 = vmatprep.subr.bf16.mxu0 0
    %1027 = vmatpush1.bf16.msra.mxu0 0
    %1028 = vmatprep.subr.bf16.mxu0 0
    %1029 = vmatpush1.bf16.msra.mxu0 0
    %1030 = vmatprep.subr.bf16.mxu0 0
    %1031 = vmatpush1.bf16.msra.mxu0 0
    %1032 = vmatprep.mubr.bf16.mxu0 0
    %1033 = vmatmul.mubr.bf16.gmra.mrb[0].mxu0 %v998
    %v1034 = vpop.f32.mrb[0].mxu0
    %v1035 = vadd.f32 %v971, %v1034
    %v1036 = vpop.f32.mrb[0].mxu0
    %v1037 = vpop.f32.mrb[0].mxu0
    %v1038 = vpop.f32.mrb[0].mxu0
    %1039 = vdwg.mxu0
    %v1040 = vmax.f32 %v1035, 0.0
    %v1041 = vld [vmem:[%s8] sm:$0xff]
    %v1042 = vld [vmem:[%s8 + $0x8] sm:$0xff]
    %v1043 = vld [vmem:[%s8 + $0x10] sm:$0xff]
    %v1044 = vld [vmem:[%s8 + $0x18] sm:$0xf]
    %v1045 = vld [vmem:[%s8 + $0x1c] sm:$0xff]
    %v1046 = vld [vmem:[%s8 + $0x24] sm:$0xff]
    %v1047 = vld [vmem:[%s8 + $0x2c] sm:$0xff]
    %v1048 = vld [vmem:[%s8 + $0x34] sm:$0xf]
    %v1049 = vld [vmem:[%s8 + $0x38] sm:$0xff]
    %v1050 = vld [vmem:[%s8 + $0x40] sm:$0xff]
    %v1051 = vld [vmem:[%s8 + $0x48] sm:$0xff]
    %v1052 = vld [vmem:[%s8 + $0x50] sm:$0xf]
    %v1053 = vld [vmem:[%s8 + $0x54] sm:$0xff]
    %v1054 = vld [vmem:[%s8 + $0x5c] sm:$0xff]
    %v1055 = vld [vmem:[%s8 + $0x64] sm:$0xff]
    %v1056 = vld [vmem:[%s8 + $0x6c] sm:$0xf]
    %v1057 = vld [vmem:[%s8 + $0x70] sm:$0xff]
    %v1058 = vld [vmem:[%s8 + $0x78] sm:$0xff]
    %v1059 = vld [vmem:[%s8 + $0x80] sm:$0xff]
    %v1060 = vld [vmem:[%s8 + $0x88] sm:$0xf]
    %v1061 = vld [vmem:[%s8 + $0x8c] sm:$0xff]
    %v1062 = vld [vmem:[%s8 + $0x94] sm:$0xff]
    %v1063 = vld [vmem:[%s8 + $0x9c] sm:$0xff]
    %v1064 = vld [vmem:[%s8 + $0xa4] sm:$0xf]
    %v1065 = vld [vmem:[%s8 + $0xa8] sm:$0xff]
    %v1066 = vld [vmem:[%s8 + $0xb0] sm:$0xff]
    %v1067 = vld [vmem:[%s8 + $0xb8] sm:$0xff]
    %v1068 = vld [vmem:[%s8 + $0xc0] sm:$0xf]
    %v1069 = vld [vmem:[%s8 + $0xc4] sm:$0xff]
    %v1070 = vld [vmem:[%s8 + $0xcc] sm:$0xff]
    %v1071 = vld [vmem:[%s8 + $0xd4] sm:$0xff]
    %v1072 = vld [vmem:[%s8 + $0xdc] sm:$0xf]
    %v1073 = vld [vmem:[%s8 + $0xe0] sm:$0xff]
    %v1074 = vld [vmem:[%s8 + $0xe8] sm:$0xff]
    %v1075 = vld [vmem:[%s8 + $0xf0] sm:$0xff]
    %v1076 = vld [vmem:[%s8 + $0xf8] sm:$0xf]
    %v1077 = vld [vmem:[%s8 + $0xfc] sm:$0xff]
    %v1078 = vld [vmem:[%s8 + $0x104] sm:$0xff]
    %v1079 = vld [vmem:[%s8 + $0x10c] sm:$0xff]
    %v1080 = vld [vmem:[%s8 + $0x114] sm:$0xf]
    %v1081 = vld [vmem:[%s8 + $0x118] sm:$0xff]
    %v1082 = vld [vmem:[%s8 + $0x120] sm:$0xff]
    %v1083 = vld [vmem:[%s8 + $0x128] sm:$0xff]
    %v1084 = vld [vmem:[%s8 + $0x130] sm:$0xf]
    %v1085 = vld [vmem:[%s8 + $0x134] sm:$0xff]
    %v1086 = vld [vmem:[%s8 + $0x13c] sm:$0xff]
    %v1087 = vld [vmem:[%s8 + $0x144] sm:$0xff]
    %v1088 = vld [vmem:[%s8 + $0x14c] sm:$0xf]
    %v1089 = vld [vmem:[%s8 + $0x150] sm:$0xff]
    %v1090 = vld [vmem:[%s8 + $0x158] sm:$0xff]
    %v1091 = vld [vmem:[%s8 + $0x160] sm:$0xff]
    %v1092 = vld [vmem:[%s8 + $0x168] sm:$0xf]
    %v1093 = vld [vmem:[%s8 + $0x16c] sm:$0xff]
    %v1094 = vld [vmem:[%s8 + $0x174] sm:$0xff]
    %v1095 = vld [vmem:[%s8 + $0x17c] sm:$0xff]
    %v1096 = vld [vmem:[%s8 + $0x184] sm:$0xf]
    %v1097 = vld [vmem:[%s8 + $0x188] sm:$0xff]
    %v1098 = vld [vmem:[%s8 + $0x190] sm:$0xff]
    %v1099 = vld [vmem:[%s8 + $0x198] sm:$0xff]
    %v1100 = vld [vmem:[%s8 + $0x1a0] sm:$0xf]
    %v1101 = vld [vmem:[%s8 + $0x1a4] sm:$0xff]
    %v1102 = vld [vmem:[%s8 + $0x1ac] sm:$0xff]
    %v1103 = vld [vmem:[%s8 + $0x1b4] sm:$0xff]
    %v1104 = vld [vmem:[%s8 + $0x1bc] sm:$0xf]
    %s1105 = scalar_lea.vmem %s9, 7
    %v1106 = vld [vmem:[%s1105] ss:$8 sm:$0xf]
    %v1107 = vld [vmem:[%s1105] ss:$8 sm:$0x70]
    %v1108 = vor.u32 %v1106, %v1107
    %v1109 = vpack.c.bf16 %v1040, %v1040
    %v1111 = vlaneseq
    %v1112 = vshrl.u32 %v1111, 7
    %v1113 = vsub.s32 0, %v1112
    %v1114 = vrot.slane %v1108, %v1113
    %v1115 = vlaneseq
    %v1116 = vshrl.u32 %v1115, 7
    %v1117 = vsub.s32 1, %v1116
    %v1118 = vrot.slane %v1108, %v1117
    %v1119 = vlaneseq
    %v1120 = vshrl.u32 %v1119, 7
    %v1121 = vsub.s32 2, %v1120
    %v1122 = vrot.slane %v1108, %v1121
    %v1123 = vlaneseq
    %v1124 = vshrl.u32 %v1123, 7
    %v1125 = vsub.s32 3, %v1124
    %v1126 = vrot.slane %v1108, %v1125
    %v1127 = vlaneseq
    %v1128 = vshrl.u32 %v1127, 7
    %v1129 = vsub.s32 4, %v1128
    %v1130 = vrot.slane %v1108, %v1129
    %v1131 = vlaneseq
    %v1132 = vshrl.u32 %v1131, 7
    %v1133 = vsub.s32 5, %v1132
    %v1134 = vrot.slane %v1108, %v1133
    %v1135 = vlaneseq
    %v1136 = vshrl.u32 %v1135, 7
    %v1137 = vsub.s32 6, %v1136
    %v1138 = vrot.slane %v1108, %v1137
    %v1210 = vunpack.c.l.b16 %v1041
    %v1211 = vunpack.c.h.b16 %v1041
    %v1212 = vunpack.c.l.b16 %v1042
    %v1213 = vunpack.c.h.b16 %v1042
    %v1214 = vunpack.c.l.b16 %v1043
    %v1215 = vunpack.c.h.b16 %v1043
    %v1216 = vunpack.c.l.b16 %v1044
    %v1217 = vunpack.c.l.b16 %v1045
    %v1218 = vunpack.c.h.b16 %v1045
    %v1219 = vunpack.c.l.b16 %v1046
    %v1220 = vunpack.c.h.b16 %v1046
    %v1221 = vunpack.c.l.b16 %v1047
    %v1222 = vunpack.c.h.b16 %v1047
    %v1223 = vunpack.c.l.b16 %v1048
    %v1224 = vunpack.c.l.b16 %v1049
    %v1225 = vunpack.c.h.b16 %v1049
    %v1226 = vunpack.c.l.b16 %v1050
    %v1227 = vunpack.c.h.b16 %v1050
    %v1228 = vunpack.c.l.b16 %v1051
    %v1229 = vunpack.c.h.b16 %v1051
    %v1230 = vunpack.c.l.b16 %v1052
    %v1231 = vunpack.c.l.b16 %v1053
    %v1232 = vunpack.c.h.b16 %v1053
    %v1233 = vunpack.c.l.b16 %v1054
    %v1234 = vunpack.c.h.b16 %v1054
    %v1235 = vunpack.c.l.b16 %v1055
    %v1236 = vunpack.c.h.b16 %v1055
    %v1237 = vunpack.c.l.b16 %v1056
    %v1238 = vunpack.c.l.b16 %v1057
    %v1239 = vunpack.c.h.b16 %v1057
    %v1240 = vunpack.c.l.b16 %v1058
    %v1241 = vunpack.c.h.b16 %v1058
    %v1242 = vunpack.c.l.b16 %v1059
    %v1243 = vunpack.c.h.b16 %v1059
    %v1244 = vunpack.c.l.b16 %v1060
    %v1245 = vunpack.c.l.b16 %v1061
    %v1246 = vunpack.c.h.b16 %v1061
    %v1247 = vunpack.c.l.b16 %v1062
    %v1248 = vunpack.c.h.b16 %v1062
    %v1249 = vunpack.c.l.b16 %v1063
    %v1250 = vunpack.c.h.b16 %v1063
    %v1251 = vunpack.c.l.b16 %v1064
    %v1252 = vunpack.c.l.b16 %v1065
    %v1253 = vunpack.c.h.b16 %v1065
    %v1254 = vunpack.c.l.b16 %v1066
    %v1255 = vunpack.c.h.b16 %v1066
    %v1256 = vunpack.c.l.b16 %v1067
    %v1257 = vunpack.c.h.b16 %v1067
    %v1258 = vunpack.c.l.b16 %v1068
    %v1259 = vunpack.c.l.b16 %v1069
    %v1260 = vunpack.c.h.b16 %v1069
    %v1261 = vunpack.c.l.b16 %v1070
    %v1262 = vunpack.c.h.b16 %v1070
    %v1263 = vunpack.c.l.b16 %v1071
    %v1264 = vunpack.c.h.b16 %v1071
    %v1265 = vunpack.c.l.b16 %v1072
    %v1266 = vunpack.c.l.b16 %v1073
    %v1267 = vunpack.c.h.b16 %v1073
    %v1268 = vunpack.c.l.b16 %v1074
    %v1269 = vunpack.c.h.b16 %v1074
    %v1270 = vunpack.c.l.b16 %v1075
    %v1271 = vunpack.c.h.b16 %v1075
    %v1272 = vunpack.c.l.b16 %v1076
    %v1273 = vunpack.c.l.b16 %v1077
    %v1274 = vunpack.c.h.b16 %v1077
    %v1275 = vunpack.c.l.b16 %v1078
    %v1276 = vunpack.c.h.b16 %v1078
    %v1277 = vunpack.c.l.b16 %v1079
    %v1278 = vunpack.c.h.b16 %v1079
    %v1279 = vunpack.c.l.b16 %v1080
    %v1280 = vunpack.c.l.b16 %v1081
    %v1281 = vunpack.c.h.b16 %v1081
    %v1282 = vunpack.c.l.b16 %v1082
    %v1283 = vunpack.c.h.b16 %v1082
    %v1284 = vunpack.c.l.b16 %v1083
    %v1285 = vunpack.c.h.b16 %v1083
    %v1286 = vunpack.c.l.b16 %v1084
    %v1287 = vunpack.c.l.b16 %v1085
    %v1288 = vunpack.c.h.b16 %v1085
    %v1289 = vunpack.c.l.b16 %v1086
    %v1290 = vunpack.c.h.b16 %v1086
    %v1291 = vunpack.c.l.b16 %v1087
    %v1292 = vunpack.c.h.b16 %v1087
    %v1293 = vunpack.c.l.b16 %v1088
    %v1294 = vunpack.c.l.b16 %v1089
    %v1295 = vunpack.c.h.b16 %v1089
    %v1296 = vunpack.c.l.b16 %v1090
    %v1297 = vunpack.c.h.b16 %v1090
    %v1298 = vunpack.c.l.b16 %v1091
    %v1299 = vunpack.c.h.b16 %v1091
    %v1300 = vunpack.c.l.b16 %v1092
    %v1301 = vunpack.c.l.b16 %v1093
    %v1302 = vunpack.c.h.b16 %v1093
    %v1303 = vunpack.c.l.b16 %v1094
    %v1304 = vunpack.c.h.b16 %v1094
    %v1305 = vunpack.c.l.b16 %v1095
    %v1306 = vunpack.c.h.b16 %v1095
    %v1307 = vunpack.c.l.b16 %v1096
    %v1308 = vunpack.c.l.b16 %v1097
    %v1309 = vunpack.c.h.b16 %v1097
    %v1310 = vunpack.c.l.b16 %v1098
    %v1311 = vunpack.c.h.b16 %v1098
    %v1312 = vunpack.c.l.b16 %v1099
    %v1313 = vunpack.c.h.b16 %v1099
    %v1314 = vunpack.c.l.b16 %v1100
    %v1315 = vunpack.c.l.b16 %v1101
    %v1316 = vunpack.c.h.b16 %v1101
    %v1317 = vunpack.c.l.b16 %v1102
    %v1318 = vunpack.c.h.b16 %v1102
    %v1319 = vunpack.c.l.b16 %v1103
    %v1320 = vunpack.c.h.b16 %v1103
    %v1321 = vunpack.c.l.b16 %v1104
    %v1322 = vpack.c.b16 %v1217, %v1210
    %v1323 = vpack.c.b16 %v1218, %v1211
    %v1324 = vpack.c.b16 %v1219, %v1212
    %v1325 = vpack.c.b16 %v1220, %v1213
    %v1326 = vpack.c.b16 %v1221, %v1214
    %v1327 = vpack.c.b16 %v1222, %v1215
    %v1328 = vpack.c.b16 %v1223, %v1216
    %v1329 = vpack.c.b16 %v1231, %v1224
    %v1330 = vpack.c.b16 %v1232, %v1225
    %v1331 = vpack.c.b16 %v1233, %v1226
    %v1332 = vpack.c.b16 %v1234, %v1227
    %v1333 = vpack.c.b16 %v1235, %v1228
    %v1334 = vpack.c.b16 %v1236, %v1229
    %v1335 = vpack.c.b16 %v1237, %v1230
    %v1336 = vpack.c.b16 %v1245, %v1238
    %v1337 = vpack.c.b16 %v1246, %v1239
    %v1338 = vpack.c.b16 %v1247, %v1240
    %v1339 = vpack.c.b16 %v1248, %v1241
    %v1340 = vpack.c.b16 %v1249, %v1242
    %v1341 = vpack.c.b16 %v1250, %v1243
    %v1342 = vpack.c.b16 %v1251, %v1244
    %v1343 = vpack.c.b16 %v1259, %v1252
    %v1344 = vpack.c.b16 %v1260, %v1253
    %v1345 = vpack.c.b16 %v1261, %v1254
    %v1346 = vpack.c.b16 %v1262, %v1255
    %v1347 = vpack.c.b16 %v1263, %v1256
    %v1348 = vpack.c.b16 %v1264, %v1257
    %v1349 = vpack.c.b16 %v1265, %v1258
    %v1350 = vpack.c.b16 %v1273, %v1266
    %v1351 = vpack.c.b16 %v1274, %v1267
    %v1352 = vpack.c.b16 %v1275, %v1268
    %v1353 = vpack.c.b16 %v1276, %v1269
    %v1354 = vpack.c.b16 %v1277, %v1270
    %v1355 = vpack.c.b16 %v1278, %v1271
    %v1356 = vpack.c.b16 %v1279, %v1272
    %v1357 = vpack.c.b16 %v1287, %v1280
    %v1358 = vpack.c.b16 %v1288, %v1281
    %v1359 = vpack.c.b16 %v1289, %v1282
    %v1360 = vpack.c.b16 %v1290, %v1283
    %v1361 = vpack.c.b16 %v1291, %v1284
    %v1362 = vpack.c.b16 %v1292, %v1285
    %v1363 = vpack.c.b16 %v1293, %v1286
    %v1364 = vpack.c.b16 %v1301, %v1294
    %v1365 = vpack.c.b16 %v1302, %v1295
    %v1366 = vpack.c.b16 %v1303, %v1296
    %v1367 = vpack.c.b16 %v1304, %v1297
    %v1368 = vpack.c.b16 %v1305, %v1298
    %v1369 = vpack.c.b16 %v1306, %v1299
    %v1370 = vpack.c.b16 %v1307, %v1300
    %v1371 = vpack.c.b16 %v1315, %v1308
    %v1372 = vpack.c.b16 %v1316, %v1309
    %v1373 = vpack.c.b16 %v1317, %v1310
    %v1374 = vpack.c.b16 %v1318, %v1311
    %v1375 = vpack.c.b16 %v1319, %v1312
    %v1376 = vpack.c.b16 %v1320, %v1313
    %v1377 = vpack.c.b16 %v1321, %v1314
    %1434 = vmatprep.subr.bf16.mxu0 %v1323
    %1435 = vmatpush1.bf16.msra.mxu0 %v1322
    %1436 = vmatprep.subr.bf16.mxu0 %v1330
    %1437 = vmatpush1.bf16.msra.mxu0 %v1329
    %1438 = vmatprep.subr.bf16.mxu0 %v1337
    %1439 = vmatpush1.bf16.msra.mxu0 %v1336
    %1440 = vmatprep.subr.bf16.mxu0 %v1344
    %1441 = vmatpush1.bf16.msra.mxu0 %v1343
    %1442 = vmatprep.subr.bf16.mxu0 %v1351
    %1443 = vmatpush1.bf16.msra.mxu0 %v1350
    %1444 = vmatprep.subr.bf16.mxu0 %v1358
    %1445 = vmatpush1.bf16.msra.mxu0 %v1357
    %1446 = vmatprep.subr.bf16.mxu0 %v1365
    %1447 = vmatpush1.bf16.msra.mxu0 %v1364
    %1448 = vmatprep.subr.bf16.mxu0 %v1372
    %1449 = vmatpush1.bf16.msra.mxu0 %v1371
    %1450 = vmatprep.subr.bf16.mxu0 0
    %1451 = vmatpush1.bf16.msra.mxu0 0
    %1452 = vmatprep.subr.bf16.mxu0 0
    %1453 = vmatpush1.bf16.msra.mxu0 0
    %1454 = vmatprep.subr.bf16.mxu0 0
    %1455 = vmatpush1.bf16.msra.mxu0 0
    %1456 = vmatprep.subr.bf16.mxu0 0
    %1457 = vmatpush1.bf16.msra.mxu0 0
    %1458 = vmatprep.subr.bf16.mxu0 0
    %1459 = vmatpush1.bf16.msra.mxu0 0
    %1460 = vmatprep.subr.bf16.mxu0 0
    %1461 = vmatpush1.bf16.msra.mxu0 0
    %1462 = vmatprep.subr.bf16.mxu0 0
    %1463 = vmatpush1.bf16.msra.mxu0 0
    %1464 = vmatprep.subr.bf16.mxu0 0
    %1465 = vmatpush1.bf16.msra.mxu0 0
    %1466 = vmatprep.mubr.bf16.mxu0 0
    %1467 = vmatmul.mubr.bf16.gmra.mrb[0].mxu0 %v1109
    %v1468 = vpop.f32.mrb[0].mxu0
    %v1469 = vadd.f32 %v1114, %v1468
    %v1470 = vpop.f32.mrb[0].mxu0
    %v1471 = vadd.f32 %v1118, %v1470
    %v1472 = vpop.f32.mrb[0].mxu0
    %v1473 = vpop.f32.mrb[0].mxu0
    %1474 = vdwg.mxu0
    %1475 = vmatprep.subr.bf16.mxu0 %v1325
    %1476 = vmatpush1.bf16.msra.mxu0 %v1324
    %1477 = vmatprep.subr.bf16.mxu0 %v1332
    %1478 = vmatpush1.bf16.msra.mxu0 %v1331
    %1479 = vmatprep.subr.bf16.mxu0 %v1339
    %1480 = vmatpush1.bf16.msra.mxu0 %v1338
    %1481 = vmatprep.subr.bf16.mxu0 %v1346
    %1482 = vmatpush1.bf16.msra.mxu0 %v1345
    %1483 = vmatprep.subr.bf16.mxu0 %v1353
    %1484 = vmatpush1.bf16.msra.mxu0 %v1352
    %1485 = vmatprep.subr.bf16.mxu0 %v1360
    %1486 = vmatpush1.bf16.msra.mxu0 %v1359
    %1487 = vmatprep.subr.bf16.mxu0 %v1367
    %1488 = vmatpush1.bf16.msra.mxu0 %v1366
    %1489 = vmatprep.subr.bf16.mxu0 %v1374
    %1490 = vmatpush1.bf16.msra.mxu0 %v1373
    %1491 = vmatprep.subr.bf16.mxu0 0
    %1492 = vmatpush1.bf16.msra.mxu0 0
    %1493 = vmatprep.subr.bf16.mxu0 0
    %1494 = vmatpush1.bf16.msra.mxu0 0
    %1495 = vmatprep.subr.bf16.mxu0 0
    %1496 = vmatpush1.bf16.msra.mxu0 0
    %1497 = vmatprep.subr.bf16.mxu0 0
    %1498 = vmatpush1.bf16.msra.mxu0 0
    %1499 = vmatprep.subr.bf16.mxu0 0
    %1500 = vmatpush1.bf16.msra.mxu0 0
    %1501 = vmatprep.subr.bf16.mxu0 0
    %1502 = vmatpush1.bf16.msra.mxu0 0
    %1503 = vmatprep.subr.bf16.mxu0 0
    %1504 = vmatpush1.bf16.msra.mxu0 0
    %1505 = vmatprep.subr.bf16.mxu0 0
    %1506 = vmatpush1.bf16.msra.mxu0 0
    %1507 = vmatprep.mubr.bf16.mxu0 0
    %1508 = vmatmul.mubr.bf16.gmra.mrb[0].mxu0 %v1109
    %v1509 = vpop.f32.mrb[0].mxu0
    %v1510 = vadd.f32 %v1122, %v1509
    %v1511 = vpop.f32.mrb[0].mxu0
    %v1512 = vadd.f32 %v1126, %v1511
    %v1513 = vpop.f32.mrb[0].mxu0
    %v1514 = vpop.f32.mrb[0].mxu0
    %1515 = vdwg.mxu0
    %1516 = vmatprep.subr.bf16.mxu0 %v1327
    %1517 = vmatpush1.bf16.msra.mxu0 %v1326
    %1518 = vmatprep.subr.bf16.mxu0 %v1334
    %1519 = vmatpush1.bf16.msra.mxu0 %v1333
    %1520 = vmatprep.subr.bf16.mxu0 %v1341
    %1521 = vmatpush1.bf16.msra.mxu0 %v1340
    %1522 = vmatprep.subr.bf16.mxu0 %v1348
    %1523 = vmatpush1.bf16.msra.mxu0 %v1347
    %1524 = vmatprep.subr.bf16.mxu0 %v1355
    %1525 = vmatpush1.bf16.msra.mxu0 %v1354
    %1526 = vmatprep.subr.bf16.mxu0 %v1362
    %1527 = vmatpush1.bf16.msra.mxu0 %v1361
    %1528 = vmatprep.subr.bf16.mxu0 %v1369
    %1529 = vmatpush1.bf16.msra.mxu0 %v1368
    %1530 = vmatprep.subr.bf16.mxu0 %v1376
    %1531 = vmatpush1.bf16.msra.mxu0 %v1375
    %1532 = vmatprep.subr.bf16.mxu0 0
    %1533 = vmatpush1.bf16.msra.mxu0 0
    %1534 = vmatprep.subr.bf16.mxu0 0
    %1535 = vmatpush1.bf16.msra.mxu0 0
    %1536 = vmatprep.subr.bf16.mxu0 0
    %1537 = vmatpush1.bf16.msra.mxu0 0
    %1538 = vmatprep.subr.bf16.mxu0 0
    %1539 = vmatpush1.bf16.msra.mxu0 0
    %1540 = vmatprep.subr.bf16.mxu0 0
    %1541 = vmatpush1.bf16.msra.mxu0 0
    %1542 = vmatprep.subr.bf16.mxu0 0
    %1543 = vmatpush1.bf16.msra.mxu0 0
    %1544 = vmatprep.subr.bf16.mxu0 0
    %1545 = vmatpush1.bf16.msra.mxu0 0
    %1546 = vmatprep.subr.bf16.mxu0 0
    %1547 = vmatpush1.bf16.msra.mxu0 0
    %1548 = vmatprep.mubr.bf16.mxu0 0
    %1549 = vmatmul.mubr.bf16.gmra.mrb[0].mxu0 %v1109
    %v1550 = vpop.f32.mrb[0].mxu0
    %v1551 = vadd.f32 %v1130, %v1550
    %v1552 = vpop.f32.mrb[0].mxu0
    %v1553 = vadd.f32 %v1134, %v1552
    %v1554 = vpop.f32.mrb[0].mxu0
    %v1555 = vpop.f32.mrb[0].mxu0
    %1556 = vdwg.mxu0
    %1557 = vmatprep.subr.bf16.mxu0 0
    %1558 = vmatpush1.bf16.msra.mxu0 %v1328
    %1559 = vmatprep.subr.bf16.mxu0 0
    %1560 = vmatpush1.bf16.msra.mxu0 %v1335
    %1561 = vmatprep.subr.bf16.mxu0 0
    %1562 = vmatpush1.bf16.msra.mxu0 %v1342
    %1563 = vmatprep.subr.bf16.mxu0 0
    %1564 = vmatpush1.bf16.msra.mxu0 %v1349
    %1565 = vmatprep.subr.bf16.mxu0 0
    %1566 = vmatpush1.bf16.msra.mxu0 %v1356
    %1567 = vmatprep.subr.bf16.mxu0 0
    %1568 = vmatpush1.bf16.msra.mxu0 %v1363
    %1569 = vmatprep.subr.bf16.mxu0 0
    %1570 = vmatpush1.bf16.msra.mxu0 %v1370
    %1571 = vmatprep.subr.bf16.mxu0 0
    %1572 = vmatpush1.bf16.msra.mxu0 %v1377
    %1573 = vmatprep.subr.bf16.mxu0 0
    %1574 = vmatpush1.bf16.msra.mxu0 0
    %1575 = vmatprep.subr.bf16.mxu0 0
    %1576 = vmatpush1.bf16.msra.mxu0 0
    %1577 = vmatprep.subr.bf16.mxu0 0
    %1578 = vmatpush1.bf16.msra.mxu0 0
    %1579 = vmatprep.subr.bf16.mxu0 0
    %1580 = vmatpush1.bf16.msra.mxu0 0
    %1581 = vmatprep.subr.bf16.mxu0 0
    %1582 = vmatpush1.bf16.msra.mxu0 0
    %1583 = vmatprep.subr.bf16.mxu0 0
    %1584 = vmatpush1.bf16.msra.mxu0 0
    %1585 = vmatprep.subr.bf16.mxu0 0
    %1586 = vmatpush1.bf16.msra.mxu0 0
    %1587 = vmatprep.subr.bf16.mxu0 0
    %1588 = vmatpush1.bf16.msra.mxu0 0
    %1589 = vmatprep.mubr.bf16.mxu0 0
    %1590 = vmatmul.mubr.bf16.gmra.mrb[0].mxu0 %v1109
    %v1591 = vpop.f32.mrb[0].mxu0
    %v1592 = vadd.f32 %v1138, %v1591
    %v1593 = vpop.f32.mrb[0].mxu0
    %v1594 = vpop.f32.mrb[0].mxu0
    %v1595 = vpop.f32.mrb[0].mxu0
    %1596 = vdwg.mxu0
    %v1597 = vmul.f32 %v1469, 0.5
    %v1598 = vmul.f32 %v1471, 0.5
    %v1599 = vmul.f32 %v1510, 0.5
    %v1600 = vmul.f32 %v1512, 0.5
    %v1601 = vmul.f32 %v1551, 0.5
    %v1602 = vmul.f32 %v1553, 0.5
    %v1603 = vmul.f32 %v1592, 0.5
    %v1604 = vtanh.pop %v1597
    %v1605 = vtanh.pop %v1598
    %v1606 = vtanh.pop %v1599
    %v1607 = vtanh.pop %v1600
    %v1608 = vtanh.pop %v1601
    %v1609 = vtanh.pop %v1602
    %v1610 = vtanh.pop %v1603
    %v1611 = vmul.f32 %v1604, 0.5
    %v1612 = vmul.f32 %v1605, 0.5
    %v1613 = vmul.f32 %v1606, 0.5
    %v1614 = vmul.f32 %v1607, 0.5
    %v1615 = vmul.f32 %v1608, 0.5
    %v1616 = vmul.f32 %v1609, 0.5
    %v1617 = vmul.f32 %v1610, 0.5
    %v1618 = vadd.f32 %v1611, 0.5
    %v1619 = vadd.f32 %v1612, 0.5
    %v1620 = vadd.f32 %v1613, 0.5
    %v1621 = vadd.f32 %v1614, 0.5
    %v1622 = vadd.f32 %v1615, 0.5
    %v1623 = vadd.f32 %v1616, 0.5
    %v1624 = vadd.f32 %v1617, 0.5
    %v1625 = vpack.c.bf16 %v1618, %v1618
    %v1626 = vpack.c.bf16 %v1619, %v1619
    %v1627 = vpack.c.bf16 %v1620, %v1620
    %v1628 = vpack.c.bf16 %v1621, %v1621
    %v1629 = vpack.c.bf16 %v1622, %v1622
    %v1630 = vpack.c.bf16 %v1623, %v1623
    %v1631 = vpack.c.bf16 %v1624, %v1624
    %v1639 = vunpack.c.l.b16 %v1625
    %v1640 = vunpack.c.l.b16 %v1626
    %v1641 = vunpack.c.l.b16 %v1627
    %v1642 = vunpack.c.l.b16 %v1628
    %v1643 = vunpack.c.l.b16 %v1629
    %v1644 = vunpack.c.l.b16 %v1630
    %v1645 = vunpack.c.l.b16 %v1631
    %v1646 = vpack.c.b16 %v1640, %v1639
    %v1647 = vpack.c.b16 %v1642, %v1641
    %v1648 = vpack.c.b16 %v1644, %v1643
    %v1649 = vpack.c.b16 %v1645, %v1645
    %1654 = vst [vmem:[#allocation2] sm:$0xff] %v1646
    %1655 = vst [vmem:[#allocation2 + $0x8] sm:$0xff] %v1647
    %1656 = vst [vmem:[#allocation2 + $0x10] sm:$0xff] %v1648
    %vm1657 = vcmask 125952
    %1658 = vst.msk [vmem:[#allocation2 + $0x18] sm:$0xf] %vm1657, %v1649
    // Predicated region
    $region42: #{tpu_custom_call.1} parent=1 // pred_check
      _
    $region43: #{tpu_custom_call.1} parent=1 // pred_check_branch
      %1660 = sbr.rel (0) target = $region45
    $region44: #{tpu_custom_call.1} parent=1 // pred_region
      %s1662 = ssub.s32 448, 448
      %1663 = vsyncadd [#allocation3], %s1662
      %s1665 = sshll.u32 [#allocation2], 4
      %s1666 = int_to_ptr.vmem [resolvable:$true] %s1665
      %1668 = dma.vmem_to_hbm [thread:$0]  %s1666, 448, %s10, [#allocation3]
    $region45: #{tpu_custom_call.1} parent=1 // pred_fallthru
      _
    // Predicated region
    $region46: #{tpu_custom_call.1} parent=1 // pred_check
      _
    $region47: #{tpu_custom_call.1} parent=1 // pred_check_branch
      %1670 = sbr.rel (0) target = $region49
    $region48: #{tpu_custom_call.1} parent=1 // pred_region
      %1671 = dma.done [#allocation3], 448
    $region49: #{tpu_custom_call.1} parent=1 // pred_fallthru
      _
    %1672 = vsyncpa [#allocation3], 1

</llo_original>
